<compile_context>
chip_gen: v7x
topology: tpu7x:2x2x1
jax: 0.10.0
libtpu: 0.0.40
codegen_flags: <defaults>
</compile_context>

<pallas_src>
import functools

import numpy as np
import jax
import jax.numpy as jnp
from jax.experimental import pallas as pl
from jax.experimental.pallas import tpu as pltpu


def _round_up(x, m):
    return (x + m - 1) // m * m


def _resblock_kernel(x_ref, w1_ref, b1_ref, w2_ref, b2_ref, mask_ref, o_ref,
                     *, H, W, res_scale):
    """Residual block on a block of `nb` images.

    x_ref   : (nb, C, W0)  f32   flattened zero-padded planes, plane at lanes [TAP, TAP+P)
    w1_ref  : (3, C, 3C)   bf16  conv1 weights, grouped per ky (K = 3*C im2col over kx)
    b1_ref  : (C, 1)       f32
    w2_ref  : (3, C, 3C)   bf16
    b2_ref  : (C, 1)       f32
    mask_ref: (1, W1)      f32   1.0 on interior plane positions, 0.0 elsewhere
    o_ref   : (nb, C, W2)  f32   full-width output plane (origin 0); wrapper crops
    """
    nb, C, W0 = x_ref.shape
    W2 = o_ref.shape[-1]
    Wp = W + 2                 # padded row width
    L = Wp + 1                 # flattened offset between a plane and its interior
    TAP = 2 * L                # largest tap offset (= 2*Wp + 2)
    W1 = W2 + TAP              # width of the conv1 activation plane

    interior = mask_ref[...]   # (1, W1), broadcast over channels (sublanes)

    for i in range(nb):        # static unroll over the images of this block
        xi = x_ref[i]                              # (C, W0) f32
        xb = xi.astype(jnp.bfloat16)

        # ---- conv1: 3 matmuls, K = 3*C, contiguous static lane windows -------
        acc1 = jnp.zeros((C, W1), jnp.float32)
        for dy in range(3):
            base = dy * Wp
            patch = jnp.concatenate(
                [xb[:, base + dx: base + dx + W1] for dx in range(3)], axis=0)
            acc1 = acc1 + jnp.dot(w1_ref[dy], patch,
                                  preferred_element_type=jnp.float32)
        act = jnp.maximum(acc1 + b1_ref[...], 0.0)      # bias + ReLU
        # Masking the non-interior columns *is* the re-padding of the
        # intermediate activation (no VMEM scratch, no halo zeroing).
        act = (act * interior).astype(jnp.bfloat16)     # (C, W1) bf16

        # ---- conv2: same structure, reading contiguous windows of `act` ------
        acc2 = jnp.zeros((C, W2), jnp.float32)
        for dy in range(3):
            base = dy * Wp
            patch = jnp.concatenate(
                [act[:, base + dx: base + dx + W2] for dx in range(3)], axis=0)
            acc2 = acc2 + jnp.dot(w2_ref[dy], patch,
                                  preferred_element_type=jnp.float32)

        # ---- residual add (identity kept in f32) -----------------------------
        identity = xi[:, TAP: TAP + W2]                 # (C, W2) f32
        out = identity + (acc2 + b2_ref[...]) * res_scale
        o_ref[i, :, :] = out.astype(o_ref.dtype)


def residual_block_nobn(x_nchw, w1, b1, w2, b2, res_scale=1.0):
    """x_nchw: (N, C, H, W) f32; w1/w2: (Cout, Cin, 3, 3); b1/b2: (C,)."""
    N, C, H, W = x_nchw.shape
    Hp, Wp = H + 2, W + 2
    P = Hp * Wp                    # flattened padded-plane length
    L = Wp + 1
    TAP = 2 * L                    # largest conv tap offset
    # Output plane width must reach the last interior position; round the input
    # width up to a multiple of 128 so every lane tile of the input is dense.
    W2_min = (H + 1) * Wp
    W0 = _round_up(max(W2_min + 2 * TAP, TAP + P), 128)
    W2 = W0 - 2 * TAP
    W1 = W0 - TAP

    # ---- inputs: channels stay on sublanes (native NCHW) -> no transpose -----
    xpad = jnp.pad(x_nchw.astype(jnp.float32), ((0, 0), (0, 0), (1, 1), (1, 1)))
    xflat = xpad.reshape(N, C, P)                                    # free reshape
    xflat = jnp.pad(xflat, ((0, 0), (0, 0), (TAP, W0 - TAP - P)))    # (N, C, W0)

    # ---- weights: (Cout, Cin, 3, 3) -> (ky, Cout, 3*Cin) bf16; biases (C,1) ---
    w1g = jnp.transpose(w1, (2, 0, 3, 1)).reshape(3, C, 3 * C).astype(jnp.bfloat16)
    w2g = jnp.transpose(w2, (2, 0, 3, 1)).reshape(3, C, 3 * C).astype(jnp.bfloat16)
    b1r = b1.reshape(C, 1).astype(jnp.float32)
    b2r = b2.reshape(C, 1).astype(jnp.float32)

    # ---- interior mask over the activation plane (constant, built on host) ---
    jj = np.arange(W1)
    p = jj - L
    row, col = p // Wp, p % Wp
    interior_np = (p >= 0) & (row >= 1) & (row <= H) & (col >= 1) & (col <= W)
    mask = jnp.asarray(interior_np.astype(np.float32)).reshape(1, W1)

    # ---- several images per grid step (amortize per-step pipeline overhead) --
    bytes_per_img = C * (W0 + W2) * 4 * 2          # in + out, double-buffered
    nb = max(1, min(N, (8 << 20) // max(bytes_per_img, 1)))
    while N % nb:
        nb -= 1
    grid = (N // nb,)

    kernel = functools.partial(_resblock_kernel, H=H, W=W,
                               res_scale=float(res_scale))

    out_fw = pl.pallas_call(
        kernel,
        out_shape=jax.ShapeDtypeStruct((N, C, W2), jnp.float32),
        grid_spec=pltpu.PrefetchScalarGridSpec(
            num_scalar_prefetch=0,
            grid=grid,
            in_specs=[
                pl.BlockSpec((nb, C, W0), lambda g: (g, 0, 0)),
                pl.BlockSpec((3, C, 3 * C), lambda g: (0, 0, 0)),
                pl.BlockSpec((C, 1), lambda g: (0, 0)),
                pl.BlockSpec((3, C, 3 * C), lambda g: (0, 0, 0)),
                pl.BlockSpec((C, 1), lambda g: (0, 0)),
                pl.BlockSpec((1, W1), lambda g: (0, 0)),
            ],
            out_specs=pl.BlockSpec((nb, C, W2), lambda g: (g, 0, 0)),
        ),
        compiler_params=pltpu.CompilerParams(
            dimension_semantics=("parallel",)),
    )(xflat, w1g, b1r, w2g, b2r, mask)

    # Crop the full-width plane back to (N, C, H, W): plane index = row*Wp + col,
    # interior rows 1..H and cols 1..W.
    out = out_fw[:, :, :(H + 1) * Wp].reshape(N, C, H + 1, Wp)[:, :, 1:, 1:W + 1]
    return out


def _reference(x, w1, b1, w2, b2, res_scale):
    dn = ("NCHW", "OIHW", "NCHW")
    y = jax.lax.conv_general_dilated(x, w1, (1, 1), "SAME",
                                     dimension_numbers=dn) + b1[None, :, None, None]
    y = jnp.maximum(y, 0.0)
    y = jax.lax.conv_general_dilated(y, w2, (1, 1), "SAME",
                                     dimension_numbers=dn) + b2[None, :, None, None]
    return x + y * res_scale


if __name__ == "__main__":
    N, C, H, W = 2, 32, 16, 16          # mid_channels = 32 (module default)
    res_scale = 1.0

    key = jax.random.PRNGKey(0)
    kx, k1, k2, k3, k4 = jax.random.split(key, 5)
    x = jax.random.normal(kx, (N, C, H, W), jnp.float32)
    # Conv2d parameter shapes: (Cout, Cin, 3, 3) and (Cout,)
    w1 = jax.random.normal(k1, (C, C, 3, 3), jnp.float32) * 0.05
    b1 = jax.random.normal(k2, (C,), jnp.float32) * 0.05
    w2 = jax.random.normal(k3, (C, C, 3, 3), jnp.float32) * 0.05
    b2 = jax.random.normal(k4, (C,), jnp.float32) * 0.05

    out = residual_block_nobn(x, w1, b1, w2, b2, res_scale)
    out = jax.block_until_ready(out)

    ref = _reference(x, w1, b1, w2, b2, res_scale)
    assert out.shape == (N, C, H, W)
    max_err = float(jnp.max(jnp.abs(out - ref)))
    # bf16 MXU operands (f32 accumulation) -> tolerance relaxed vs. pure f32.
    assert jnp.allclose(out, ref, atol=3e-2, rtol=3e-2), max_err

    print("KERNEL_OK")
</pallas_src>

<mosaic_0001>
module attributes {stable_mosaic.version = 11 : i64} {
  func.func @_resblock_kernel(%arg0: i32, %arg1: memref<2x32x384xf32, #tpu.memory_space<vmem>>, %arg2: memref<3x32x96xbf16, #tpu.memory_space<vmem>>, %arg3: memref<32x1xf32, #tpu.memory_space<vmem>>, %arg4: memref<3x32x96xbf16, #tpu.memory_space<vmem>>, %arg5: memref<32x1xf32, #tpu.memory_space<vmem>>, %arg6: memref<1x346xf32, #tpu.memory_space<vmem>>, %arg7: memref<2x32x308xf32, #tpu.memory_space<vmem>>) attributes {dimension_semantics = [#tpu.dimension_semantics<parallel>], iteration_bounds = array<i64: 1>, scalar_prefetch = 0 : i64, scratch_operands = 0 : i64, tpu.core_type = #tpu.core_type<tc>, window_params = [{transform_indices = @transform_0, window_bounds = array<i64: 2, 32, 384>}, {pipeline_mode = #tpu.pipeline_mode<synchronous>, transform_indices = @transform_1, window_bounds = array<i64: 3, 32, 96>}, {pipeline_mode = #tpu.pipeline_mode<synchronous>, transform_indices = @transform_2, window_bounds = array<i64: 32, 1>}, {pipeline_mode = #tpu.pipeline_mode<synchronous>, transform_indices = @transform_3, window_bounds = array<i64: 3, 32, 96>}, {pipeline_mode = #tpu.pipeline_mode<synchronous>, transform_indices = @transform_4, window_bounds = array<i64: 32, 1>}, {pipeline_mode = #tpu.pipeline_mode<synchronous>, transform_indices = @transform_5, window_bounds = array<i64: 1, 346>}, {transform_indices = @transform_6, window_bounds = array<i64: 2, 32, 308>}]} {
    %c0 = arith.constant 0 : index
    %c0_0 = arith.constant 0 : index
    %0 = vector.load %arg6[%c0, %c0_0] : memref<1x346xf32, #tpu.memory_space<vmem>>, vector<1x346xf32>
    %c0_1 = arith.constant 0 : index
    %c0_2 = arith.constant 0 : index
    %c0_3 = arith.constant 0 : index
    %1 = vector.load %arg1[%c0_1, %c0_2, %c0_3] : memref<2x32x384xf32, #tpu.memory_space<vmem>>, vector<1x32x384xf32>
    %2 = vector.shape_cast %1 : vector<1x32x384xf32> to vector<32x384xf32>
    %3 = arith.truncf %2 : vector<32x384xf32> to vector<32x384xbf16>
    %cst = arith.constant 0.000000e+00 : f32
    %4 = vector.broadcast %cst : f32 to vector<32x346xf32>
    %5 = vector.extract_strided_slice %3 {offsets = [0, 0], sizes = [32, 346], strides = [1, 1]} : vector<32x384xbf16> to vector<32x346xbf16>
    %6 = vector.extract_strided_slice %3 {offsets = [0, 1], sizes = [32, 346], strides = [1, 1]} : vector<32x384xbf16> to vector<32x346xbf16>
    %7 = vector.extract_strided_slice %3 {offsets = [0, 2], sizes = [32, 346], strides = [1, 1]} : vector<32x384xbf16> to vector<32x346xbf16>
    %8 = tpu.concatenate %5, %6, %7 in 0 : vector<32x346xbf16>, vector<32x346xbf16>, vector<32x346xbf16> -> vector<96x346xbf16>
    %c0_4 = arith.constant 0 : index
    %c0_5 = arith.constant 0 : index
    %c0_6 = arith.constant 0 : index
    %9 = vector.load %arg2[%c0_4, %c0_5, %c0_6] : memref<3x32x96xbf16, #tpu.memory_space<vmem>>, vector<1x32x96xbf16>
    %10 = vector.shape_cast %9 : vector<1x32x96xbf16> to vector<32x96xbf16>
    %cst_7 = arith.constant dense<0.000000e+00> : vector<32x346xf32>
    %11 = tpu.matmul %10, %8, %cst_7 {dimension_numbers = #tpu.dot_dimension_numbers<[1], [0], [0], [1], [0, 0, 1, 1], [], []>} : vector<32x96xbf16>, vector<96x346xbf16>, vector<32x346xf32> -> vector<32x346xf32>
    %12 = arith.addf %4, %11 : vector<32x346xf32>
    %13 = vector.extract_strided_slice %3 {offsets = [0, 18], sizes = [32, 346], strides = [1, 1]} : vector<32x384xbf16> to vector<32x346xbf16>
    %14 = vector.extract_strided_slice %3 {offsets = [0, 19], sizes = [32, 346], strides = [1, 1]} : vector<32x384xbf16> to vector<32x346xbf16>
    %15 = vector.extract_strided_slice %3 {offsets = [0, 20], sizes = [32, 346], strides = [1, 1]} : vector<32x384xbf16> to vector<32x346xbf16>
    %16 = tpu.concatenate %13, %14, %15 in 0 : vector<32x346xbf16>, vector<32x346xbf16>, vector<32x346xbf16> -> vector<96x346xbf16>
    %c1 = arith.constant 1 : index
    %c0_8 = arith.constant 0 : index
    %c0_9 = arith.constant 0 : index
    %17 = vector.load %arg2[%c1, %c0_8, %c0_9] : memref<3x32x96xbf16, #tpu.memory_space<vmem>>, vector<1x32x96xbf16>
    %18 = vector.shape_cast %17 : vector<1x32x96xbf16> to vector<32x96xbf16>
    %cst_10 = arith.constant dense<0.000000e+00> : vector<32x346xf32>
    %19 = tpu.matmul %18, %16, %cst_10 {dimension_numbers = #tpu.dot_dimension_numbers<[1], [0], [0], [1], [0, 0, 1, 1], [], []>} : vector<32x96xbf16>, vector<96x346xbf16>, vector<32x346xf32> -> vector<32x346xf32>
    %20 = arith.addf %12, %19 : vector<32x346xf32>
    %21 = vector.extract_strided_slice %3 {offsets = [0, 36], sizes = [32, 346], strides = [1, 1]} : vector<32x384xbf16> to vector<32x346xbf16>
    %22 = vector.extract_strided_slice %3 {offsets = [0, 37], sizes = [32, 346], strides = [1, 1]} : vector<32x384xbf16> to vector<32x346xbf16>
    %23 = vector.extract_strided_slice %3 {offsets = [0, 38], sizes = [32, 346], strides = [1, 1]} : vector<32x384xbf16> to vector<32x346xbf16>
    %24 = tpu.concatenate %21, %22, %23 in 0 : vector<32x346xbf16>, vector<32x346xbf16>, vector<32x346xbf16> -> vector<96x346xbf16>
    %c2 = arith.constant 2 : index
    %c0_11 = arith.constant 0 : index
    %c0_12 = arith.constant 0 : index
    %25 = vector.load %arg2[%c2, %c0_11, %c0_12] : memref<3x32x96xbf16, #tpu.memory_space<vmem>>, vector<1x32x96xbf16>
    %26 = vector.shape_cast %25 : vector<1x32x96xbf16> to vector<32x96xbf16>
    %cst_13 = arith.constant dense<0.000000e+00> : vector<32x346xf32>
    %27 = tpu.matmul %26, %24, %cst_13 {dimension_numbers = #tpu.dot_dimension_numbers<[1], [0], [0], [1], [0, 0, 1, 1], [], []>} : vector<32x96xbf16>, vector<96x346xbf16>, vector<32x346xf32> -> vector<32x346xf32>
    %28 = arith.addf %20, %27 : vector<32x346xf32>
    %c0_14 = arith.constant 0 : index
    %c0_15 = arith.constant 0 : index
    %29 = vector.load %arg3[%c0_14, %c0_15] : memref<32x1xf32, #tpu.memory_space<vmem>>, vector<32x1xf32>
    %30 = vector.broadcast %29 : vector<32x1xf32> to vector<32x346xf32>
    %31 = arith.addf %28, %30 : vector<32x346xf32>
    %cst_16 = arith.constant 0.000000e+00 : f32
    %32 = vector.broadcast %cst_16 : f32 to vector<32x346xf32>
    %33 = arith.maximumf %31, %32 : vector<32x346xf32>
    %34 = vector.broadcast %0 : vector<1x346xf32> to vector<32x346xf32>
    %35 = arith.mulf %33, %34 : vector<32x346xf32>
    %36 = arith.truncf %35 : vector<32x346xf32> to vector<32x346xbf16>
    %cst_17 = arith.constant 0.000000e+00 : f32
    %37 = vector.broadcast %cst_17 : f32 to vector<32x308xf32>
    %38 = vector.extract_strided_slice %36 {offsets = [0, 0], sizes = [32, 308], strides = [1, 1]} : vector<32x346xbf16> to vector<32x308xbf16>
    %39 = vector.extract_strided_slice %36 {offsets = [0, 1], sizes = [32, 308], strides = [1, 1]} : vector<32x346xbf16> to vector<32x308xbf16>
    %40 = vector.extract_strided_slice %36 {offsets = [0, 2], sizes = [32, 308], strides = [1, 1]} : vector<32x346xbf16> to vector<32x308xbf16>
    %41 = tpu.concatenate %38, %39, %40 in 0 : vector<32x308xbf16>, vector<32x308xbf16>, vector<32x308xbf16> -> vector<96x308xbf16>
    %c0_18 = arith.constant 0 : index
    %c0_19 = arith.constant 0 : index
    %c0_20 = arith.constant 0 : index
    %42 = vector.load %arg4[%c0_18, %c0_19, %c0_20] : memref<3x32x96xbf16, #tpu.memory_space<vmem>>, vector<1x32x96xbf16>
    %43 = vector.shape_cast %42 : vector<1x32x96xbf16> to vector<32x96xbf16>
    %cst_21 = arith.constant dense<0.000000e+00> : vector<32x308xf32>
    %44 = tpu.matmul %43, %41, %cst_21 {dimension_numbers = #tpu.dot_dimension_numbers<[1], [0], [0], [1], [0, 0, 1, 1], [], []>} : vector<32x96xbf16>, vector<96x308xbf16>, vector<32x308xf32> -> vector<32x308xf32>
    %45 = arith.addf %37, %44 : vector<32x308xf32>
    %46 = vector.extract_strided_slice %36 {offsets = [0, 18], sizes = [32, 308], strides = [1, 1]} : vector<32x346xbf16> to vector<32x308xbf16>
    %47 = vector.extract_strided_slice %36 {offsets = [0, 19], sizes = [32, 308], strides = [1, 1]} : vector<32x346xbf16> to vector<32x308xbf16>
    %48 = vector.extract_strided_slice %36 {offsets = [0, 20], sizes = [32, 308], strides = [1, 1]} : vector<32x346xbf16> to vector<32x308xbf16>
    %49 = tpu.concatenate %46, %47, %48 in 0 : vector<32x308xbf16>, vector<32x308xbf16>, vector<32x308xbf16> -> vector<96x308xbf16>
    %c1_22 = arith.constant 1 : index
    %c0_23 = arith.constant 0 : index
    %c0_24 = arith.constant 0 : index
    %50 = vector.load %arg4[%c1_22, %c0_23, %c0_24] : memref<3x32x96xbf16, #tpu.memory_space<vmem>>, vector<1x32x96xbf16>
    %51 = vector.shape_cast %50 : vector<1x32x96xbf16> to vector<32x96xbf16>
    %cst_25 = arith.constant dense<0.000000e+00> : vector<32x308xf32>
    %52 = tpu.matmul %51, %49, %cst_25 {dimension_numbers = #tpu.dot_dimension_numbers<[1], [0], [0], [1], [0, 0, 1, 1], [], []>} : vector<32x96xbf16>, vector<96x308xbf16>, vector<32x308xf32> -> vector<32x308xf32>
    %53 = arith.addf %45, %52 : vector<32x308xf32>
    %54 = vector.extract_strided_slice %36 {offsets = [0, 36], sizes = [32, 308], strides = [1, 1]} : vector<32x346xbf16> to vector<32x308xbf16>
    %55 = vector.extract_strided_slice %36 {offsets = [0, 37], sizes = [32, 308], strides = [1, 1]} : vector<32x346xbf16> to vector<32x308xbf16>
    %56 = vector.extract_strided_slice %36 {offsets = [0, 38], sizes = [32, 308], strides = [1, 1]} : vector<32x346xbf16> to vector<32x308xbf16>
    %57 = tpu.concatenate %54, %55, %56 in 0 : vector<32x308xbf16>, vector<32x308xbf16>, vector<32x308xbf16> -> vector<96x308xbf16>
    %c2_26 = arith.constant 2 : index
    %c0_27 = arith.constant 0 : index
    %c0_28 = arith.constant 0 : index
    %58 = vector.load %arg4[%c2_26, %c0_27, %c0_28] : memref<3x32x96xbf16, #tpu.memory_space<vmem>>, vector<1x32x96xbf16>
    %59 = vector.shape_cast %58 : vector<1x32x96xbf16> to vector<32x96xbf16>
    %cst_29 = arith.constant dense<0.000000e+00> : vector<32x308xf32>
    %60 = tpu.matmul %59, %57, %cst_29 {dimension_numbers = #tpu.dot_dimension_numbers<[1], [0], [0], [1], [0, 0, 1, 1], [], []>} : vector<32x96xbf16>, vector<96x308xbf16>, vector<32x308xf32> -> vector<32x308xf32>
    %61 = arith.addf %53, %60 : vector<32x308xf32>
    %62 = vector.extract_strided_slice %2 {offsets = [0, 38], sizes = [32, 308], strides = [1, 1]} : vector<32x384xf32> to vector<32x308xf32>
    %c0_30 = arith.constant 0 : index
    %c0_31 = arith.constant 0 : index
    %63 = vector.load %arg5[%c0_30, %c0_31] : memref<32x1xf32, #tpu.memory_space<vmem>>, vector<32x1xf32>
    %64 = vector.broadcast %63 : vector<32x1xf32> to vector<32x308xf32>
    %65 = arith.addf %61, %64 : vector<32x308xf32>
    %cst_32 = arith.constant 1.000000e+00 : f32
    %66 = vector.broadcast %cst_32 : f32 to vector<32x308xf32>
    %67 = arith.mulf %65, %66 : vector<32x308xf32>
    %68 = arith.addf %62, %67 : vector<32x308xf32>
    %c0_33 = arith.constant 0 : index
    %c0_34 = arith.constant 0 : index
    %c0_35 = arith.constant 0 : index
    %69 = vector.load %arg7[%c0_33, %c0_34, %c0_35] : memref<2x32x308xf32, #tpu.memory_space<vmem>>, vector<1x32x308xf32>
    %70 = vector.shape_cast %69 : vector<1x32x308xf32> to vector<32x308xf32>
    %71 = vector.shape_cast %68 : vector<32x308xf32> to vector<1x32x308xf32>
    tpu.vector_store %arg7[%c0_33, %c0_34, %c0_35], %71 {strides = array<i32>} : memref<2x32x308xf32, #tpu.memory_space<vmem>>, vector<1x32x308xf32>,
    %c1_36 = arith.constant 1 : index
    %c0_37 = arith.constant 0 : index
    %c0_38 = arith.constant 0 : index
    %72 = vector.load %arg1[%c1_36, %c0_37, %c0_38] : memref<2x32x384xf32, #tpu.memory_space<vmem>>, vector<1x32x384xf32>
    %73 = vector.shape_cast %72 : vector<1x32x384xf32> to vector<32x384xf32>
    %74 = arith.truncf %73 : vector<32x384xf32> to vector<32x384xbf16>
    %cst_39 = arith.constant 0.000000e+00 : f32
    %75 = vector.broadcast %cst_39 : f32 to vector<32x346xf32>
    %76 = vector.extract_strided_slice %74 {offsets = [0, 0], sizes = [32, 346], strides = [1, 1]} : vector<32x384xbf16> to vector<32x346xbf16>
    %77 = vector.extract_strided_slice %74 {offsets = [0, 1], sizes = [32, 346], strides = [1, 1]} : vector<32x384xbf16> to vector<32x346xbf16>
    %78 = vector.extract_strided_slice %74 {offsets = [0, 2], sizes = [32, 346], strides = [1, 1]} : vector<32x384xbf16> to vector<32x346xbf16>
    %79 = tpu.concatenate %76, %77, %78 in 0 : vector<32x346xbf16>, vector<32x346xbf16>, vector<32x346xbf16> -> vector<96x346xbf16>
    %c0_40 = arith.constant 0 : index
    %c0_41 = arith.constant 0 : index
    %c0_42 = arith.constant 0 : index
    %80 = vector.load %arg2[%c0_40, %c0_41, %c0_42] : memref<3x32x96xbf16, #tpu.memory_space<vmem>>, vector<1x32x96xbf16>
    %81 = vector.shape_cast %80 : vector<1x32x96xbf16> to vector<32x96xbf16>
    %cst_43 = arith.constant dense<0.000000e+00> : vector<32x346xf32>
    %82 = tpu.matmul %81, %79, %cst_43 {dimension_numbers = #tpu.dot_dimension_numbers<[1], [0], [0], [1], [0, 0, 1, 1], [], []>} : vector<32x96xbf16>, vector<96x346xbf16>, vector<32x346xf32> -> vector<32x346xf32>
    %83 = arith.addf %75, %82 : vector<32x346xf32>
    %84 = vector.extract_strided_slice %74 {offsets = [0, 18], sizes = [32, 346], strides = [1, 1]} : vector<32x384xbf16> to vector<32x346xbf16>
    %85 = vector.extract_strided_slice %74 {offsets = [0, 19], sizes = [32, 346], strides = [1, 1]} : vector<32x384xbf16> to vector<32x346xbf16>
    %86 = vector.extract_strided_slice %74 {offsets = [0, 20], sizes = [32, 346], strides = [1, 1]} : vector<32x384xbf16> to vector<32x346xbf16>
    %87 = tpu.concatenate %84, %85, %86 in 0 : vector<32x346xbf16>, vector<32x346xbf16>, vector<32x346xbf16> -> vector<96x346xbf16>
    %c1_44 = arith.constant 1 : index
    %c0_45 = arith.constant 0 : index
    %c0_46 = arith.constant 0 : index
    %88 = vector.load %arg2[%c1_44, %c0_45, %c0_46] : memref<3x32x96xbf16, #tpu.memory_space<vmem>>, vector<1x32x96xbf16>
    %89 = vector.shape_cast %88 : vector<1x32x96xbf16> to vector<32x96xbf16>
    %cst_47 = arith.constant dense<0.000000e+00> : vector<32x346xf32>
    %90 = tpu.matmul %89, %87, %cst_47 {dimension_numbers = #tpu.dot_dimension_numbers<[1], [0], [0], [1], [0, 0, 1, 1], [], []>} : vector<32x96xbf16>, vector<96x346xbf16>, vector<32x346xf32> -> vector<32x346xf32>
    %91 = arith.addf %83, %90 : vector<32x346xf32>
    %92 = vector.extract_strided_slice %74 {offsets = [0, 36], sizes = [32, 346], strides = [1, 1]} : vector<32x384xbf16> to vector<32x346xbf16>
    %93 = vector.extract_strided_slice %74 {offsets = [0, 37], sizes = [32, 346], strides = [1, 1]} : vector<32x384xbf16> to vector<32x346xbf16>
    %94 = vector.extract_strided_slice %74 {offsets = [0, 38], sizes = [32, 346], strides = [1, 1]} : vector<32x384xbf16> to vector<32x346xbf16>
    %95 = tpu.concatenate %92, %93, %94 in 0 : vector<32x346xbf16>, vector<32x346xbf16>, vector<32x346xbf16> -> vector<96x346xbf16>
    %c2_48 = arith.constant 2 : index
    %c0_49 = arith.constant 0 : index
    %c0_50 = arith.constant 0 : index
    %96 = vector.load %arg2[%c2_48, %c0_49, %c0_50] : memref<3x32x96xbf16, #tpu.memory_space<vmem>>, vector<1x32x96xbf16>
    %97 = vector.shape_cast %96 : vector<1x32x96xbf16> to vector<32x96xbf16>
    %cst_51 = arith.constant dense<0.000000e+00> : vector<32x346xf32>
    %98 = tpu.matmul %97, %95, %cst_51 {dimension_numbers = #tpu.dot_dimension_numbers<[1], [0], [0], [1], [0, 0, 1, 1], [], []>} : vector<32x96xbf16>, vector<96x346xbf16>, vector<32x346xf32> -> vector<32x346xf32>
    %99 = arith.addf %91, %98 : vector<32x346xf32>
    %c0_52 = arith.constant 0 : index
    %c0_53 = arith.constant 0 : index
    %100 = vector.load %arg3[%c0_52, %c0_53] : memref<32x1xf32, #tpu.memory_space<vmem>>, vector<32x1xf32>
    %101 = vector.broadcast %100 : vector<32x1xf32> to vector<32x346xf32>
    %102 = arith.addf %99, %101 : vector<32x346xf32>
    %cst_54 = arith.constant 0.000000e+00 : f32
    %103 = vector.broadcast %cst_54 : f32 to vector<32x346xf32>
    %104 = arith.maximumf %102, %103 : vector<32x346xf32>
    %105 = vector.broadcast %0 : vector<1x346xf32> to vector<32x346xf32>
    %106 = arith.mulf %104, %105 : vector<32x346xf32>
    %107 = arith.truncf %106 : vector<32x346xf32> to vector<32x346xbf16>
    %cst_55 = arith.constant 0.000000e+00 : f32
    %108 = vector.broadcast %cst_55 : f32 to vector<32x308xf32>
    %109 = vector.extract_strided_slice %107 {offsets = [0, 0], sizes = [32, 308], strides = [1, 1]} : vector<32x346xbf16> to vector<32x308xbf16>
    %110 = vector.extract_strided_slice %107 {offsets = [0, 1], sizes = [32, 308], strides = [1, 1]} : vector<32x346xbf16> to vector<32x308xbf16>
    %111 = vector.extract_strided_slice %107 {offsets = [0, 2], sizes = [32, 308], strides = [1, 1]} : vector<32x346xbf16> to vector<32x308xbf16>
    %112 = tpu.concatenate %109, %110, %111 in 0 : vector<32x308xbf16>, vector<32x308xbf16>, vector<32x308xbf16> -> vector<96x308xbf16>
    %c0_56 = arith.constant 0 : index
    %c0_57 = arith.constant 0 : index
    %c0_58 = arith.constant 0 : index
    %113 = vector.load %arg4[%c0_56, %c0_57, %c0_58] : memref<3x32x96xbf16, #tpu.memory_space<vmem>>, vector<1x32x96xbf16>
    %114 = vector.shape_cast %113 : vector<1x32x96xbf16> to vector<32x96xbf16>
    %cst_59 = arith.constant dense<0.000000e+00> : vector<32x308xf32>
    %115 = tpu.matmul %114, %112, %cst_59 {dimension_numbers = #tpu.dot_dimension_numbers<[1], [0], [0], [1], [0, 0, 1, 1], [], []>} : vector<32x96xbf16>, vector<96x308xbf16>, vector<32x308xf32> -> vector<32x308xf32>
    %116 = arith.addf %108, %115 : vector<32x308xf32>
    %117 = vector.extract_strided_slice %107 {offsets = [0, 18], sizes = [32, 308], strides = [1, 1]} : vector<32x346xbf16> to vector<32x308xbf16>
    %118 = vector.extract_strided_slice %107 {offsets = [0, 19], sizes = [32, 308], strides = [1, 1]} : vector<32x346xbf16> to vector<32x308xbf16>
    %119 = vector.extract_strided_slice %107 {offsets = [0, 20], sizes = [32, 308], strides = [1, 1]} : vector<32x346xbf16> to vector<32x308xbf16>
    %120 = tpu.concatenate %117, %118, %119 in 0 : vector<32x308xbf16>, vector<32x308xbf16>, vector<32x308xbf16> -> vector<96x308xbf16>
    %c1_60 = arith.constant 1 : index
    %c0_61 = arith.constant 0 : index
    %c0_62 = arith.constant 0 : index
    %121 = vector.load %arg4[%c1_60, %c0_61, %c0_62] : memref<3x32x96xbf16, #tpu.memory_space<vmem>>, vector<1x32x96xbf16>
    %122 = vector.shape_cast %121 : vector<1x32x96xbf16> to vector<32x96xbf16>
    %cst_63 = arith.constant dense<0.000000e+00> : vector<32x308xf32>
    %123 = tpu.matmul %122, %120, %cst_63 {dimension_numbers = #tpu.dot_dimension_numbers<[1], [0], [0], [1], [0, 0, 1, 1], [], []>} : vector<32x96xbf16>, vector<96x308xbf16>, vector<32x308xf32> -> vector<32x308xf32>
    %124 = arith.addf %116, %123 : vector<32x308xf32>
    %125 = vector.extract_strided_slice %107 {offsets = [0, 36], sizes = [32, 308], strides = [1, 1]} : vector<32x346xbf16> to vector<32x308xbf16>
    %126 = vector.extract_strided_slice %107 {offsets = [0, 37], sizes = [32, 308], strides = [1, 1]} : vector<32x346xbf16> to vector<32x308xbf16>
    %127 = vector.extract_strided_slice %107 {offsets = [0, 38], sizes = [32, 308], strides = [1, 1]} : vector<32x346xbf16> to vector<32x308xbf16>
    %128 = tpu.concatenate %125, %126, %127 in 0 : vector<32x308xbf16>, vector<32x308xbf16>, vector<32x308xbf16> -> vector<96x308xbf16>
    %c2_64 = arith.constant 2 : index
    %c0_65 = arith.constant 0 : index
    %c0_66 = arith.constant 0 : index
    %129 = vector.load %arg4[%c2_64, %c0_65, %c0_66] : memref<3x32x96xbf16, #tpu.memory_space<vmem>>, vector<1x32x96xbf16>
    %130 = vector.shape_cast %129 : vector<1x32x96xbf16> to vector<32x96xbf16>
    %cst_67 = arith.constant dense<0.000000e+00> : vector<32x308xf32>
    %131 = tpu.matmul %130, %128, %cst_67 {dimension_numbers = #tpu.dot_dimension_numbers<[1], [0], [0], [1], [0, 0, 1, 1], [], []>} : vector<32x96xbf16>, vector<96x308xbf16>, vector<32x308xf32> -> vector<32x308xf32>
    %132 = arith.addf %124, %131 : vector<32x308xf32>
    %133 = vector.extract_strided_slice %73 {offsets = [0, 38], sizes = [32, 308], strides = [1, 1]} : vector<32x384xf32> to vector<32x308xf32>
    %c0_68 = arith.constant 0 : index
    %c0_69 = arith.constant 0 : index
    %134 = vector.load %arg5[%c0_68, %c0_69] : memref<32x1xf32, #tpu.memory_space<vmem>>, vector<32x1xf32>
    %135 = vector.broadcast %134 : vector<32x1xf32> to vector<32x308xf32>
    %136 = arith.addf %132, %135 : vector<32x308xf32>
    %cst_70 = arith.constant 1.000000e+00 : f32
    %137 = vector.broadcast %cst_70 : f32 to vector<32x308xf32>
    %138 = arith.mulf %136, %137 : vector<32x308xf32>
    %139 = arith.addf %133, %138 : vector<32x308xf32>
    %c1_71 = arith.constant 1 : index
    %c0_72 = arith.constant 0 : index
    %c0_73 = arith.constant 0 : index
    %140 = vector.load %arg7[%c1_71, %c0_72, %c0_73] : memref<2x32x308xf32, #tpu.memory_space<vmem>>, vector<1x32x308xf32>
    %141 = vector.shape_cast %140 : vector<1x32x308xf32> to vector<32x308xf32>
    %142 = vector.shape_cast %139 : vector<32x308xf32> to vector<1x32x308xf32>
    tpu.vector_store %arg7[%c1_71, %c0_72, %c0_73], %142 {strides = array<i32>} : memref<2x32x308xf32, #tpu.memory_space<vmem>>, vector<1x32x308xf32>,
    return
  }
  func.func @transform_0(%arg0: i32) -> (i32, i32, i32) {
    %c0_i32 = arith.constant 0 : i32
    %c0_i32_0 = arith.constant 0 : i32
    %c0_i32_1 = arith.constant 0 : i32
    return %arg0, %c0_i32, %c0_i32_0 : i32, i32, i32
  }
  func.func @transform_1(%arg0: i32) -> (i32, i32, i32) {
    %c0_i32 = arith.constant 0 : i32
    %c0_i32_0 = arith.constant 0 : i32
    %c0_i32_1 = arith.constant 0 : i32
    %c0_i32_2 = arith.constant 0 : i32
    return %c0_i32, %c0_i32_0, %c0_i32_1 : i32, i32, i32
  }
  func.func @transform_2(%arg0: i32) -> (i32, i32) {
    %c0_i32 = arith.constant 0 : i32
    %c0_i32_0 = arith.constant 0 : i32
    %c0_i32_1 = arith.constant 0 : i32
    return %c0_i32, %c0_i32_0 : i32, i32
  }
  func.func @transform_3(%arg0: i32) -> (i32, i32, i32) {
    %c0_i32 = arith.constant 0 : i32
    %c0_i32_0 = arith.constant 0 : i32
    %c0_i32_1 = arith.constant 0 : i32
    %c0_i32_2 = arith.constant 0 : i32
    return %c0_i32, %c0_i32_0, %c0_i32_1 : i32, i32, i32
  }
  func.func @transform_4(%arg0: i32) -> (i32, i32) {
    %c0_i32 = arith.constant 0 : i32
    %c0_i32_0 = arith.constant 0 : i32
    %c0_i32_1 = arith.constant 0 : i32
    return %c0_i32, %c0_i32_0 : i32, i32
  }
  func.func @transform_5(%arg0: i32) -> (i32, i32) {
    %c0_i32 = arith.constant 0 : i32
    %c0_i32_0 = arith.constant 0 : i32
    %c0_i32_1 = arith.constant 0 : i32
    return %c0_i32, %c0_i32_0 : i32, i32
  }
  func.func @transform_6(%arg0: i32) -> (i32, i32, i32) {
    %c0_i32 = arith.constant 0 : i32
    %c0_i32_0 = arith.constant 0 : i32
    %c0_i32_1 = arith.constant 0 : i32
    return %arg0, %c0_i32, %c0_i32_0 : i32, i32, i32
  }
}

</mosaic_0001>

<llo_original>
// kernel: tpu_custom_call.1
$region0: #{tpu_custom_call.1}
  #allocation0 [shape = 'u32[]', space=smem, size = 0x4, offset = 0x4, fixed_abs, tag = 'smem constant byte address 0x4 - core index']
  #allocation1 [shape = 'u32[144,128]{1,0:T(1,128)}', space=vmem, size = 0x12000, scoped, tag = 'internal scratch']
  %s0 = inlined_call_operand.hbm [shape: f32[2,32,384], index: 0, kind: input, shape index: {}]
  %s1 = inlined_call_operand.vmem [shape: bf16[3,32,96], index: 1, kind: input, shape index: {}]
  %s2 = inlined_call_operand.vmem [shape: f32[32,1], index: 2, kind: input, shape index: {}]
  %s3 = inlined_call_operand.hbm [shape: bf16[3,32,96], index: 3, kind: input, shape index: {}]
  %s4 = inlined_call_operand.vmem [shape: f32[32,1], index: 4, kind: input, shape index: {}]
  %s5 = inlined_call_operand.vmem [shape: f32[1,346], index: 5, kind: input, shape index: {}]
  %s6 = inlined_call_operand.hbm [shape: f32[2,32,308], index: 6, kind: output, shape index: {}]
  %s7 = sld [smem:[#allocation0]]
  $region42: #{tpu_custom_call.1} parent=0
    _
  %s9 = ssub.s32 1, %s7
  %s10 = scalar_select 0, %s9, %s7
  $region1: #{tpu_custom_call.1} parent=0
    #allocation2 [shape = 'u8[98304]{0}', space=vmem, size = 0x18000, scoped, tag = 'input window, operand 0, single buffered']
    #allocation3 [shape = 's32[1]{0}', space=sflag, size = 0x4, scoped, tag = 'scoped memory for tpu_custom_call.1']
    #allocation4 [shape = 's32[1]{0}', space=sflag, size = 0x4, scoped, tag = 'scoped memory for tpu_custom_call.1']
    #allocation5 [shape = 'u8[24576]{0}', space=vmem, size = 0x6000, scoped, tag = 'input window, operand 3, single buffered']
    #allocation6 [shape = 's32[1]{0}', space=sflag, size = 0x4, scoped, tag = 'scoped memory for tpu_custom_call.1']
    #allocation7 [shape = 'u8[98304]{0}', space=vmem, size = 0x18000, scoped, tag = 'output window, operand 0, single buffered']
    %11 = vsyncpa [#allocation3], 0
    %12 = vsyncpa [#allocation6], 0
    %13 = vsyncpa [#allocation4], 0
    // Predicated region
    $region2: #{tpu_custom_call.1} parent=1 // pred_check
      _
    $region3: #{tpu_custom_call.1} parent=1 // pred_check_branch
      %15 = sbr.rel (0) target = $region5
    $region4: #{tpu_custom_call.1} parent=1 // pred_region
      %s17 = ssub.s32 3072, 3072
      %18 = vsyncadd [#allocation3], %s17
      %s19 = sshll.u32 [#allocation2], 4
      %s20 = int_to_ptr.vmem [resolvable:$true] %s19
      %25 = dma.hbm_to_vmem [thread:$0]  %s0, 3072, %s20, [#allocation3], 384, 384, 24
    $region5: #{tpu_custom_call.1} parent=1 // pred_fallthru
      _
    // Predicated region
    $region6: #{tpu_custom_call.1} parent=1 // pred_check
      _
    $region7: #{tpu_custom_call.1} parent=1 // pred_check_branch
      %27 = sbr.rel (0) target = $region9
    $region8: #{tpu_custom_call.1} parent=1 // pred_region
      _
    $region9: #{tpu_custom_call.1} parent=1 // pred_fallthru
      _
    // Predicated region
    $region10: #{tpu_custom_call.1} parent=1 // pred_check
      _
    $region11: #{tpu_custom_call.1} parent=1 // pred_check_branch
      %29 = sbr.rel (0) target = $region13
    $region12: #{tpu_custom_call.1} parent=1 // pred_region
      _
    $region13: #{tpu_custom_call.1} parent=1 // pred_fallthru
      _
    // Predicated region
    $region14: #{tpu_custom_call.1} parent=1 // pred_check
      _
    $region15: #{tpu_custom_call.1} parent=1 // pred_check_branch
      %31 = sbr.rel (0) target = $region17
    $region16: #{tpu_custom_call.1} parent=1 // pred_region
      %s33 = ssub.s32 768, 768
      %34 = vsyncadd [#allocation6], %s33
      %s35 = sshll.u32 [#allocation5], 4
      %s36 = int_to_ptr.vmem [resolvable:$true] %s35
      %41 = dma.hbm_to_vmem [thread:$0]  %s3, 768, %s36, [#allocation6], 64, 64, 4
    $region17: #{tpu_custom_call.1} parent=1 // pred_fallthru
      _
    // Predicated region
    $region18: #{tpu_custom_call.1} parent=1 // pred_check
      _
    $region19: #{tpu_custom_call.1} parent=1 // pred_check_branch
      %43 = sbr.rel (0) target = $region21
    $region20: #{tpu_custom_call.1} parent=1 // pred_region
      _
    $region21: #{tpu_custom_call.1} parent=1 // pred_fallthru
      _
    // Predicated region
    $region22: #{tpu_custom_call.1} parent=1 // pred_check
      _
    $region23: #{tpu_custom_call.1} parent=1 // pred_check_branch
      %45 = sbr.rel (0) target = $region25
    $region24: #{tpu_custom_call.1} parent=1 // pred_region
      _
    $region25: #{tpu_custom_call.1} parent=1 // pred_fallthru
      _
    // Predicated region
    $region26: #{tpu_custom_call.1} parent=1 // pred_check
      _
    $region27: #{tpu_custom_call.1} parent=1 // pred_check_branch
      %47 = sbr.rel (0) target = $region29
    $region28: #{tpu_custom_call.1} parent=1 // pred_region
      %48 = dma.done [#allocation3], 3072
    $region29: #{tpu_custom_call.1} parent=1 // pred_fallthru
      _
    // Predicated region
    $region30: #{tpu_custom_call.1} parent=1 // pred_check
      _
    $region31: #{tpu_custom_call.1} parent=1 // pred_check_branch
      %50 = sbr.rel (0) target = $region33
    $region32: #{tpu_custom_call.1} parent=1 // pred_region
      %51 = dma.done [#allocation6], 768
    $region33: #{tpu_custom_call.1} parent=1 // pred_fallthru
      _
    %v53 = vld [vmem:[%s5] sm:$0x7]
    %v54 = vld [vmem:[#allocation2] sm:$0xff]
    %v55 = vld [vmem:[#allocation2 + $0x8] sm:$0xff]
    %v56 = vld [vmem:[#allocation2 + $0x10] sm:$0xff]
    %v57 = vld [vmem:[#allocation2 + $0x18] sm:$0xff]
    %v58 = vld [vmem:[#allocation2 + $0x20] sm:$0xff]
    %v59 = vld [vmem:[#allocation2 + $0x28] sm:$0xff]
    %v60 = vld [vmem:[#allocation2 + $0x30] sm:$0xff]
    %v61 = vld [vmem:[#allocation2 + $0x38] sm:$0xff]
    %v62 = vld [vmem:[#allocation2 + $0x40] sm:$0xff]
    %v63 = vld [vmem:[#allocation2 + $0x48] sm:$0xff]
    %v64 = vld [vmem:[#allocation2 + $0x50] sm:$0xff]
    %v65 = vld [vmem:[#allocation2 + $0x58] sm:$0xff]
    %v66 = vpack.c.bf16 %v57, %v54
    %v67 = vpack.c.bf16 %v58, %v55
    %v68 = vpack.c.bf16 %v59, %v56
    %v69 = vpack.c.bf16 %v63, %v60
    %v70 = vpack.c.bf16 %v64, %v61
    %v71 = vpack.c.bf16 %v65, %v62
    %78 = vrot.lane.b32.xlu0 %v66, 127
    %v79 = vpop.permute.xlu0 %78
    %80 = vrot.lane.b32.xlu0 %v67, 127
    %v81 = vpop.permute.xlu0 %80
    %82 = vrot.lane.b32.xlu0 %v68, 127
    %v83 = vpop.permute.xlu0 %82
    %84 = vrot.lane.b32.xlu0 %v69, 127
    %v85 = vpop.permute.xlu0 %84
    %86 = vrot.lane.b32.xlu0 %v70, 127
    %v87 = vpop.permute.xlu0 %86
    %88 = vrot.lane.b32.xlu0 %v71, 127
    %v89 = vpop.permute.xlu0 %88
    %vm90 = vcmask 1039360
    %v91 = vsel %vm90, %v79, %v81
    %v92 = vsel %vm90, %v81, %v83
    %v93 = vsel %vm90, %v85, %v87
    %v94 = vsel %vm90, %v87, %v89
    %101 = vrot.lane.b32.xlu0 %v66, 126
    %v102 = vpop.permute.xlu0 %101
    %103 = vrot.lane.b32.xlu0 %v67, 126
    %v104 = vpop.permute.xlu0 %103
    %105 = vrot.lane.b32.xlu0 %v68, 126
    %v106 = vpop.permute.xlu0 %105
    %107 = vrot.lane.b32.xlu0 %v69, 126
    %v108 = vpop.permute.xlu0 %107
    %109 = vrot.lane.b32.xlu0 %v70, 126
    %v110 = vpop.permute.xlu0 %109
    %111 = vrot.lane.b32.xlu0 %v71, 126
    %v112 = vpop.permute.xlu0 %111
    %vm113 = vcmask 1031168
    %v114 = vsel %vm113, %v102, %v104
    %v115 = vsel %vm113, %v104, %v106
    %v116 = vsel %vm113, %v108, %v110
    %v117 = vsel %vm113, %v110, %v112
    %v124 = vld [vmem:[%s1] sm:$0xf]
    %v125 = vld [vmem:[%s1 + $0x4] sm:$0xf]
    %v126 = vld [vmem:[%s1 + $0x8] sm:$0xf]
    %v127 = vld [vmem:[%s1 + $0xc] sm:$0xf]
    %s128 = scalar_lea.vmem %s1, 16
    %v129 = vld [vmem:[%s128] sm:$0xf]
    %v130 = vld [vmem:[%s128 + $0x4] sm:$0xf]
    %v131 = vld [vmem:[%s128 + $0x8] sm:$0xf]
    %v132 = vld [vmem:[%s128 + $0xc] sm:$0xf]
    %v137 = vunpack.c.l.b16 %v129
    %v138 = vunpack.c.l.b16 %v130
    %v139 = vunpack.c.l.b16 %v131
    %v140 = vunpack.c.l.b16 %v132
    %v141 = vpack.c.b16 %v138, %v137
    %v142 = vpack.c.b16 %v140, %v139
    %143 = vrot.lane.b32.xlu0 %v66, 110
    %v144 = vpop.permute.xlu0 %143
    %145 = vrot.lane.b32.xlu0 %v67, 110
    %v146 = vpop.permute.xlu0 %145
    %147 = vrot.lane.b32.xlu0 %v68, 110
    %v148 = vpop.permute.xlu0 %147
    %149 = vrot.lane.b32.xlu0 %v69, 110
    %v150 = vpop.permute.xlu0 %149
    %151 = vrot.lane.b32.xlu0 %v70, 110
    %v152 = vpop.permute.xlu0 %151
    %153 = vrot.lane.b32.xlu0 %v71, 110
    %v154 = vpop.permute.xlu0 %153
    %155 = vrot.lane.b32.xlu0 %v91, 110
    %v156 = vpop.permute.xlu0 %155
    %157 = vrot.lane.b32.xlu0 %v92, 110
    %v158 = vpop.permute.xlu0 %157
    %159 = vrot.lane.b32.xlu0 %v83, 110
    %v160 = vpop.permute.xlu0 %159
    %161 = vrot.lane.b32.xlu0 %v93, 110
    %v162 = vpop.permute.xlu0 %161
    %163 = vrot.lane.b32.xlu0 %v94, 110
    %v164 = vpop.permute.xlu0 %163
    %165 = vrot.lane.b32.xlu0 %v89, 110
    %v166 = vpop.permute.xlu0 %165
    %167 = vrot.lane.b32.xlu0 %v114, 110
    %v168 = vpop.permute.xlu0 %167
    %169 = vrot.lane.b32.xlu0 %v115, 110
    %v170 = vpop.permute.xlu0 %169
    %171 = vrot.lane.b32.xlu0 %v106, 110
    %v172 = vpop.permute.xlu0 %171
    %173 = vrot.lane.b32.xlu0 %v116, 110
    %v174 = vpop.permute.xlu0 %173
    %175 = vrot.lane.b32.xlu0 %v117, 110
    %v176 = vpop.permute.xlu0 %175
    %177 = vrot.lane.b32.xlu0 %v112, 110
    %v178 = vpop.permute.xlu0 %177
    %vm179 = vcmask 900096
    %v180 = vsel %vm179, %v144, %v146
    %v181 = vsel %vm179, %v146, %v148
    %v182 = vsel %vm179, %v150, %v152
    %v183 = vsel %vm179, %v152, %v154
    %v184 = vsel %vm179, %v156, %v158
    %v185 = vsel %vm179, %v158, %v160
    %v186 = vsel %vm179, %v162, %v164
    %v187 = vsel %vm179, %v164, %v166
    %v188 = vsel %vm179, %v168, %v170
    %v189 = vsel %vm179, %v170, %v172
    %v190 = vsel %vm179, %v174, %v176
    %v191 = vsel %vm179, %v176, %v178
    %vm210 = vcmask 785408
    %v212 = vsel %vm210, %v141, 0
    %v215 = vsel %vm210, %v142, 0
    %217 = vmatprep.subr.bf16.mxu0 %v181
    %218 = vmatpush1.bf16.msra.mxu0 %v180
    %219 = vmatprep.subr.bf16.mxu0 %v183
    %220 = vmatpush1.bf16.msra.mxu0 %v182
    %221 = vmatprep.subr.bf16.mxu0 %v185
    %222 = vmatpush1.bf16.msra.mxu0 %v184
    %223 = vmatprep.subr.bf16.mxu0 %v187
    %224 = vmatpush1.bf16.msra.mxu0 %v186
    %225 = vmatprep.subr.bf16.mxu0 %v189
    %226 = vmatpush1.bf16.msra.mxu0 %v188
    %227 = vmatprep.subr.bf16.mxu0 %v191
    %228 = vmatpush1.bf16.msra.mxu0 %v190
    %229 = vmatprep.subr.bf16.mxu0 0
    %230 = vmatpush1.bf16.msra.mxu0 0
    %231 = vmatprep.subr.bf16.mxu0 0
    %232 = vmatpush1.bf16.msra.mxu0 0
    %233 = vmatprep.subr.bf16.mxu0 0
    %234 = vmatpush1.bf16.msra.mxu0 0
    %235 = vmatprep.subr.bf16.mxu0 0
    %236 = vmatpush1.bf16.msra.mxu0 0
    %237 = vmatprep.subr.bf16.mxu0 0
    %238 = vmatpush1.bf16.msra.mxu0 0
    %239 = vmatprep.subr.bf16.mxu0 0
    %240 = vmatpush1.bf16.msra.mxu0 0
    %241 = vmatprep.subr.bf16.mxu0 0
    %242 = vmatpush1.bf16.msra.mxu0 0
    %243 = vmatprep.subr.bf16.mxu0 0
    %244 = vmatpush1.bf16.msra.mxu0 0
    %245 = vmatprep.subr.bf16.mxu0 0
    %246 = vmatpush1.bf16.msra.mxu0 0
    %247 = vmatprep.subr.bf16.mxu0 0
    %248 = vmatpush1.bf16.msra.mxu0 0
    %249 = vmatprep.mubr.bf16.mxu0 0
    %250 = vmatmul.mubr.bf16.gmra.mrb[0].mxu0 %v212
    %v251 = vpop.f32.mrb[0].mxu0
    %v252 = vadd.f32 0.0, %v251
    %v253 = vpop.f32.mrb[0].mxu0
    %v254 = vadd.f32 0.0, %v253
    %v255 = vpop.f32.mrb[0].mxu0
    %v256 = vadd.f32 0.0, %v255
    %v257 = vpop.f32.mrb[0].mxu0
    %v258 = vadd.f32 0.0, %v257
    %259 = vmatprep.mubr.bf16.mxu0 0
    %260 = vmatmul.mubr.bf16.gmra.mrb[0].mxu0 %v215
    %v261 = vpop.f32.mrb[0].mxu0
    %v262 = vadd.f32 0.0, %v261
    %v263 = vpop.f32.mrb[0].mxu0
    %v264 = vadd.f32 0.0, %v263
    %v265 = vpop.f32.mrb[0].mxu0
    %v266 = vadd.f32 0.0, %v265
    %v267 = vpop.f32.mrb[0].mxu0
    %v268 = vadd.f32 0.0, %v267
    %269 = vdwg.mxu0
    %270 = vmatprep.subr.bf16.mxu0 0
    %271 = vmatpush1.bf16.msra.mxu0 %v148
    %272 = vmatprep.subr.bf16.mxu0 0
    %273 = vmatpush1.bf16.msra.mxu0 %v154
    %274 = vmatprep.subr.bf16.mxu0 0
    %275 = vmatpush1.bf16.msra.mxu0 %v160
    %276 = vmatprep.subr.bf16.mxu0 0
    %277 = vmatpush1.bf16.msra.mxu0 %v166
    %278 = vmatprep.subr.bf16.mxu0 0
    %279 = vmatpush1.bf16.msra.mxu0 %v172
    %280 = vmatprep.subr.bf16.mxu0 0
    %281 = vmatpush1.bf16.msra.mxu0 %v178
    %282 = vmatprep.subr.bf16.mxu0 0
    %283 = vmatpush1.bf16.msra.mxu0 0
    %284 = vmatprep.subr.bf16.mxu0 0
    %285 = vmatpush1.bf16.msra.mxu0 0
    %286 = vmatprep.subr.bf16.mxu0 0
    %287 = vmatpush1.bf16.msra.mxu0 0
    %288 = vmatprep.subr.bf16.mxu0 0
    %289 = vmatpush1.bf16.msra.mxu0 0
    %290 = vmatprep.subr.bf16.mxu0 0
    %291 = vmatpush1.bf16.msra.mxu0 0
    %292 = vmatprep.subr.bf16.mxu0 0
    %293 = vmatpush1.bf16.msra.mxu0 0
    %294 = vmatprep.subr.bf16.mxu0 0
    %295 = vmatpush1.bf16.msra.mxu0 0
    %296 = vmatprep.subr.bf16.mxu0 0
    %297 = vmatpush1.bf16.msra.mxu0 0
    %298 = vmatprep.subr.bf16.mxu0 0
    %299 = vmatpush1.bf16.msra.mxu0 0
    %300 = vmatprep.subr.bf16.mxu0 0
    %301 = vmatpush1.bf16.msra.mxu0 0
    %302 = vmatprep.mubr.bf16.mxu0 0
    %303 = vmatmul.mubr.bf16.gmra.mrb[0].mxu0 %v212
    %v304 = vpop.f32.mrb[0].mxu0
    %v305 = vadd.f32 0.0, %v304
    %v306 = vpop.f32.mrb[0].mxu0
    %v307 = vpop.f32.mrb[0].mxu0
    %v308 = vadd.f32 0.0, %v307
    %v309 = vpop.f32.mrb[0].mxu0
    %310 = vmatprep.mubr.bf16.mxu0 0
    %311 = vmatmul.mubr.bf16.gmra.mrb[0].mxu0 %v215
    %v312 = vpop.f32.mrb[0].mxu0
    %v313 = vadd.f32 0.0, %v312
    %v314 = vpop.f32.mrb[0].mxu0
    %v315 = vpop.f32.mrb[0].mxu0
    %v316 = vadd.f32 0.0, %v315
    %v317 = vpop.f32.mrb[0].mxu0
    %318 = vdwg.mxu0
    %v323 = vunpack.c.l.b16 %v124
    %v324 = vunpack.c.l.b16 %v125
    %v325 = vunpack.c.l.b16 %v126
    %v326 = vunpack.c.l.b16 %v127
    %v327 = vpack.c.b16 %v324, %v323
    %v328 = vpack.c.b16 %v326, %v325
    %v330 = vsel %vm210, %v327, 0
    %v333 = vsel %vm210, %v328, 0
    %335 = vmatprep.subr.bf16.mxu0 %v67
    %336 = vmatpush1.bf16.msra.mxu0 %v66
    %337 = vmatprep.subr.bf16.mxu0 %v70
    %338 = vmatpush1.bf16.msra.mxu0 %v69
    %339 = vmatprep.subr.bf16.mxu0 %v92
    %340 = vmatpush1.bf16.msra.mxu0 %v91
    %341 = vmatprep.subr.bf16.mxu0 %v94
    %342 = vmatpush1.bf16.msra.mxu0 %v93
    %343 = vmatprep.subr.bf16.mxu0 %v115
    %344 = vmatpush1.bf16.msra.mxu0 %v114
    %345 = vmatprep.subr.bf16.mxu0 %v117
    %346 = vmatpush1.bf16.msra.mxu0 %v116
    %347 = vmatprep.subr.bf16.mxu0 0
    %348 = vmatpush1.bf16.msra.mxu0 0
    %349 = vmatprep.subr.bf16.mxu0 0
    %350 = vmatpush1.bf16.msra.mxu0 0
    %351 = vmatprep.subr.bf16.mxu0 0
    %352 = vmatpush1.bf16.msra.mxu0 0
    %353 = vmatprep.subr.bf16.mxu0 0
    %354 = vmatpush1.bf16.msra.mxu0 0
    %355 = vmatprep.subr.bf16.mxu0 0
    %356 = vmatpush1.bf16.msra.mxu0 0
    %357 = vmatprep.subr.bf16.mxu0 0
    %358 = vmatpush1.bf16.msra.mxu0 0
    %359 = vmatprep.subr.bf16.mxu0 0
    %360 = vmatpush1.bf16.msra.mxu0 0
    %361 = vmatprep.subr.bf16.mxu0 0
    %362 = vmatpush1.bf16.msra.mxu0 0
    %363 = vmatprep.subr.bf16.mxu0 0
    %364 = vmatpush1.bf16.msra.mxu0 0
    %365 = vmatprep.subr.bf16.mxu0 0
    %366 = vmatpush1.bf16.msra.mxu0 0
    %367 = vmatprep.mubr.bf16.mxu0 0
    %368 = vmatmul.mubr.bf16.gmra.mrb[0].mxu0 %v330
    %v369 = vpop.f32.mrb[0].mxu0
    %v370 = vadd.f32 %v252, %v369
    %v371 = vpop.f32.mrb[0].mxu0
    %v372 = vadd.f32 %v254, %v371
    %v373 = vpop.f32.mrb[0].mxu0
    %v374 = vadd.f32 %v256, %v373
    %v375 = vpop.f32.mrb[0].mxu0
    %v376 = vadd.f32 %v258, %v375
    %377 = vmatprep.mubr.bf16.mxu0 0
    %378 = vmatmul.mubr.bf16.gmra.mrb[0].mxu0 %v333
    %v379 = vpop.f32.mrb[0].mxu0
    %v380 = vadd.f32 %v262, %v379
    %v381 = vpop.f32.mrb[0].mxu0
    %v382 = vadd.f32 %v264, %v381
    %v383 = vpop.f32.mrb[0].mxu0
    %v384 = vadd.f32 %v266, %v383
    %v385 = vpop.f32.mrb[0].mxu0
    %v386 = vadd.f32 %v268, %v385
    %387 = vdwg.mxu0
    %388 = vmatprep.subr.bf16.mxu0 0
    %389 = vmatpush1.bf16.msra.mxu0 %v68
    %390 = vmatprep.subr.bf16.mxu0 0
    %391 = vmatpush1.bf16.msra.mxu0 %v71
    %392 = vmatprep.subr.bf16.mxu0 0
    %393 = vmatpush1.bf16.msra.mxu0 %v83
    %394 = vmatprep.subr.bf16.mxu0 0
    %395 = vmatpush1.bf16.msra.mxu0 %v89
    %396 = vmatprep.subr.bf16.mxu0 0
    %397 = vmatpush1.bf16.msra.mxu0 %v106
    %398 = vmatprep.subr.bf16.mxu0 0
    %399 = vmatpush1.bf16.msra.mxu0 %v112
    %400 = vmatprep.subr.bf16.mxu0 0
    %401 = vmatpush1.bf16.msra.mxu0 0
    %402 = vmatprep.subr.bf16.mxu0 0
    %403 = vmatpush1.bf16.msra.mxu0 0
    %404 = vmatprep.subr.bf16.mxu0 0
    %405 = vmatpush1.bf16.msra.mxu0 0
    %406 = vmatprep.subr.bf16.mxu0 0
    %407 = vmatpush1.bf16.msra.mxu0 0
    %408 = vmatprep.subr.bf16.mxu0 0
    %409 = vmatpush1.bf16.msra.mxu0 0
    %410 = vmatprep.subr.bf16.mxu0 0
    %411 = vmatpush1.bf16.msra.mxu0 0
    %412 = vmatprep.subr.bf16.mxu0 0
    %413 = vmatpush1.bf16.msra.mxu0 0
    %414 = vmatprep.subr.bf16.mxu0 0
    %415 = vmatpush1.bf16.msra.mxu0 0
    %416 = vmatprep.subr.bf16.mxu0 0
    %417 = vmatpush1.bf16.msra.mxu0 0
    %418 = vmatprep.subr.bf16.mxu0 0
    %419 = vmatpush1.bf16.msra.mxu0 0
    %420 = vmatprep.mubr.bf16.mxu0 0
    %421 = vmatmul.mubr.bf16.gmra.mrb[0].mxu0 %v330
    %v422 = vpop.f32.mrb[0].mxu0
    %v423 = vadd.f32 %v305, %v422
    %v424 = vpop.f32.mrb[0].mxu0
    %v425 = vpop.f32.mrb[0].mxu0
    %v426 = vadd.f32 %v308, %v425
    %v427 = vpop.f32.mrb[0].mxu0
    %428 = vmatprep.mubr.bf16.mxu0 0
    %429 = vmatmul.mubr.bf16.gmra.mrb[0].mxu0 %v333
    %v430 = vpop.f32.mrb[0].mxu0
    %v431 = vadd.f32 %v313, %v430
    %v432 = vpop.f32.mrb[0].mxu0
    %v433 = vpop.f32.mrb[0].mxu0
    %v434 = vadd.f32 %v316, %v433
    %v435 = vpop.f32.mrb[0].mxu0
    %436 = vdwg.mxu0
    %s437 = scalar_lea.vmem %s1, 32
    %v438 = vld [vmem:[%s437] sm:$0xf]
    %v439 = vld [vmem:[%s437 + $0x4] sm:$0xf]
    %v440 = vld [vmem:[%s437 + $0x8] sm:$0xf]
    %v441 = vld [vmem:[%s437 + $0xc] sm:$0xf]
    %v446 = vunpack.c.l.b16 %v438
    %v447 = vunpack.c.l.b16 %v439
    %v448 = vunpack.c.l.b16 %v440
    %v449 = vunpack.c.l.b16 %v441
    %v450 = vpack.c.b16 %v447, %v446
    %v451 = vpack.c.b16 %v449, %v448
    %452 = vrot.lane.b32.xlu0 %v66, 92
    %v453 = vpop.permute.xlu0 %452
    %454 = vrot.lane.b32.xlu0 %v67, 92
    %v455 = vpop.permute.xlu0 %454
    %456 = vrot.lane.b32.xlu0 %v68, 92
    %v457 = vpop.permute.xlu0 %456
    %458 = vrot.lane.b32.xlu0 %v69, 92
    %v459 = vpop.permute.xlu0 %458
    %460 = vrot.lane.b32.xlu0 %v70, 92
    %v461 = vpop.permute.xlu0 %460
    %462 = vrot.lane.b32.xlu0 %v71, 92
    %v463 = vpop.permute.xlu0 %462
    %464 = vrot.lane.b32.xlu0 %v91, 92
    %v465 = vpop.permute.xlu0 %464
    %466 = vrot.lane.b32.xlu0 %v92, 92
    %v467 = vpop.permute.xlu0 %466
    %468 = vrot.lane.b32.xlu0 %v83, 92
    %v469 = vpop.permute.xlu0 %468
    %470 = vrot.lane.b32.xlu0 %v93, 92
    %v471 = vpop.permute.xlu0 %470
    %472 = vrot.lane.b32.xlu0 %v94, 92
    %v473 = vpop.permute.xlu0 %472
    %474 = vrot.lane.b32.xlu0 %v89, 92
    %v475 = vpop.permute.xlu0 %474
    %476 = vrot.lane.b32.xlu0 %v114, 92
    %v477 = vpop.permute.xlu0 %476
    %478 = vrot.lane.b32.xlu0 %v115, 92
    %v479 = vpop.permute.xlu0 %478
    %480 = vrot.lane.b32.xlu0 %v106, 92
    %v481 = vpop.permute.xlu0 %480
    %482 = vrot.lane.b32.xlu0 %v116, 92
    %v483 = vpop.permute.xlu0 %482
    %484 = vrot.lane.b32.xlu0 %v117, 92
    %v485 = vpop.permute.xlu0 %484
    %486 = vrot.lane.b32.xlu0 %v112, 92
    %v487 = vpop.permute.xlu0 %486
    %vm488 = vcmask 752640
    %v489 = vsel %vm488, %v453, %v455
    %v490 = vsel %vm488, %v455, %v457
    %v491 = vsel %vm488, %v459, %v461
    %v492 = vsel %vm488, %v461, %v463
    %v493 = vsel %vm488, %v465, %v467
    %v494 = vsel %vm488, %v467, %v469
    %v495 = vsel %vm488, %v471, %v473
    %v496 = vsel %vm488, %v473, %v475
    %v497 = vsel %vm488, %v477, %v479
    %v498 = vsel %vm488, %v479, %v481
    %v499 = vsel %vm488, %v483, %v485
    %v500 = vsel %vm488, %v485, %v487
    %v520 = vsel %vm210, %v450, 0
    %v523 = vsel %vm210, %v451, 0
    %525 = vmatprep.subr.bf16.mxu0 %v490
    %526 = vmatpush1.bf16.msra.mxu0 %v489
    %527 = vmatprep.subr.bf16.mxu0 %v492
    %528 = vmatpush1.bf16.msra.mxu0 %v491
    %529 = vmatprep.subr.bf16.mxu0 %v494
    %530 = vmatpush1.bf16.msra.mxu0 %v493
    %531 = vmatprep.subr.bf16.mxu0 %v496
    %532 = vmatpush1.bf16.msra.mxu0 %v495
    %533 = vmatprep.subr.bf16.mxu0 %v498
    %534 = vmatpush1.bf16.msra.mxu0 %v497
    %535 = vmatprep.subr.bf16.mxu0 %v500
    %536 = vmatpush1.bf16.msra.mxu0 %v499
    %537 = vmatprep.subr.bf16.mxu0 0
    %538 = vmatpush1.bf16.msra.mxu0 0
    %539 = vmatprep.subr.bf16.mxu0 0
    %540 = vmatpush1.bf16.msra.mxu0 0
    %541 = vmatprep.subr.bf16.mxu0 0
    %542 = vmatpush1.bf16.msra.mxu0 0
    %543 = vmatprep.subr.bf16.mxu0 0
    %544 = vmatpush1.bf16.msra.mxu0 0
    %545 = vmatprep.subr.bf16.mxu0 0
    %546 = vmatpush1.bf16.msra.mxu0 0
    %547 = vmatprep.subr.bf16.mxu0 0
    %548 = vmatpush1.bf16.msra.mxu0 0
    %549 = vmatprep.subr.bf16.mxu0 0
    %550 = vmatpush1.bf16.msra.mxu0 0
    %551 = vmatprep.subr.bf16.mxu0 0
    %552 = vmatpush1.bf16.msra.mxu0 0
    %553 = vmatprep.subr.bf16.mxu0 0
    %554 = vmatpush1.bf16.msra.mxu0 0
    %555 = vmatprep.subr.bf16.mxu0 0
    %556 = vmatpush1.bf16.msra.mxu0 0
    %557 = vmatprep.mubr.bf16.mxu0 0
    %558 = vmatmul.mubr.bf16.gmra.mrb[0].mxu0 %v520
    %v559 = vpop.f32.mrb[0].mxu0
    %v560 = vadd.f32 0.0, %v559
    %v561 = vpop.f32.mrb[0].mxu0
    %v562 = vadd.f32 0.0, %v561
    %v563 = vpop.f32.mrb[0].mxu0
    %v564 = vadd.f32 0.0, %v563
    %v565 = vpop.f32.mrb[0].mxu0
    %v566 = vadd.f32 0.0, %v565
    %567 = vmatprep.mubr.bf16.mxu0 0
    %568 = vmatmul.mubr.bf16.gmra.mrb[0].mxu0 %v523
    %v569 = vpop.f32.mrb[0].mxu0
    %v570 = vadd.f32 0.0, %v569
    %v571 = vpop.f32.mrb[0].mxu0
    %v572 = vadd.f32 0.0, %v571
    %v573 = vpop.f32.mrb[0].mxu0
    %v574 = vadd.f32 0.0, %v573
    %v575 = vpop.f32.mrb[0].mxu0
    %v576 = vadd.f32 0.0, %v575
    %577 = vdwg.mxu0
    %578 = vmatprep.subr.bf16.mxu0 0
    %579 = vmatpush1.bf16.msra.mxu0 %v457
    %580 = vmatprep.subr.bf16.mxu0 0
    %581 = vmatpush1.bf16.msra.mxu0 %v463
    %582 = vmatprep.subr.bf16.mxu0 0
    %583 = vmatpush1.bf16.msra.mxu0 %v469
    %584 = vmatprep.subr.bf16.mxu0 0
    %585 = vmatpush1.bf16.msra.mxu0 %v475
    %586 = vmatprep.subr.bf16.mxu0 0
    %587 = vmatpush1.bf16.msra.mxu0 %v481
    %588 = vmatprep.subr.bf16.mxu0 0
    %589 = vmatpush1.bf16.msra.mxu0 %v487
    %590 = vmatprep.subr.bf16.mxu0 0
    %591 = vmatpush1.bf16.msra.mxu0 0
    %592 = vmatprep.subr.bf16.mxu0 0
    %593 = vmatpush1.bf16.msra.mxu0 0
    %594 = vmatprep.subr.bf16.mxu0 0
    %595 = vmatpush1.bf16.msra.mxu0 0
    %596 = vmatprep.subr.bf16.mxu0 0
    %597 = vmatpush1.bf16.msra.mxu0 0
    %598 = vmatprep.subr.bf16.mxu0 0
    %599 = vmatpush1.bf16.msra.mxu0 0
    %600 = vmatprep.subr.bf16.mxu0 0
    %601 = vmatpush1.bf16.msra.mxu0 0
    %602 = vmatprep.subr.bf16.mxu0 0
    %603 = vmatpush1.bf16.msra.mxu0 0
    %604 = vmatprep.subr.bf16.mxu0 0
    %605 = vmatpush1.bf16.msra.mxu0 0
    %606 = vmatprep.subr.bf16.mxu0 0
    %607 = vmatpush1.bf16.msra.mxu0 0
    %608 = vmatprep.subr.bf16.mxu0 0
    %609 = vmatpush1.bf16.msra.mxu0 0
    %610 = vmatprep.mubr.bf16.mxu0 0
    %611 = vmatmul.mubr.bf16.gmra.mrb[0].mxu0 %v520
    %v612 = vpop.f32.mrb[0].mxu0
    %v613 = vadd.f32 0.0, %v612
    %v614 = vpop.f32.mrb[0].mxu0
    %v615 = vpop.f32.mrb[0].mxu0
    %v616 = vadd.f32 0.0, %v615
    %v617 = vpop.f32.mrb[0].mxu0
    %618 = vmatprep.mubr.bf16.mxu0 0
    %619 = vmatmul.mubr.bf16.gmra.mrb[0].mxu0 %v523
    %v620 = vpop.f32.mrb[0].mxu0
    %v621 = vadd.f32 0.0, %v620
    %v622 = vpop.f32.mrb[0].mxu0
    %v623 = vpop.f32.mrb[0].mxu0
    %v624 = vadd.f32 0.0, %v623
    %v625 = vpop.f32.mrb[0].mxu0
    %626 = vdwg.mxu0
    %v627 = vadd.f32 %v370, %v560
    %v628 = vadd.f32 %v372, %v562
    %v629 = vadd.f32 %v423, %v613
    %v630 = vadd.f32 %v374, %v564
    %v631 = vadd.f32 %v376, %v566
    %v632 = vadd.f32 %v426, %v616
    %v633 = vadd.f32 %v380, %v570
    %v634 = vadd.f32 %v382, %v572
    %v635 = vadd.f32 %v431, %v621
    %v636 = vadd.f32 %v384, %v574
    %v637 = vadd.f32 %v386, %v576
    %v638 = vadd.f32 %v434, %v624
    %v639 = vld [vmem:[%s2] sm:$0xff]
    %v640 = vld [vmem:[%s2 + $0x8] sm:$0xff]
    %v641 = vld [vmem:[%s2 + $0x10] sm:$0xff]
    %v642 = vld [vmem:[%s2 + $0x18] sm:$0xff]
    %644 = vset.pattern.permute.xlu0 0
    %645 = vperm.xlu0 %644, %v639
    %v646 = vpop.permute.xlu0 %645
    %649 = vset.pattern.permute.xlu0 0
    %650 = vperm.xlu0 %649, %v640
    %v651 = vpop.permute.xlu0 %650
    %654 = vset.pattern.permute.xlu0 0
    %655 = vperm.xlu0 %654, %v641
    %v656 = vpop.permute.xlu0 %655
    %659 = vset.pattern.permute.xlu0 0
    %660 = vperm.xlu0 %659, %v642
    %v661 = vpop.permute.xlu0 %660
    %v663 = vadd.f32 %v627, %v646
    %v664 = vadd.f32 %v628, %v646
    %v665 = vadd.f32 %v629, %v646
    %v666 = vadd.f32 %v630, %v651
    %v667 = vadd.f32 %v631, %v651
    %v668 = vadd.f32 %v632, %v651
    %v669 = vadd.f32 %v633, %v656
    %v670 = vadd.f32 %v634, %v656
    %v671 = vadd.f32 %v635, %v656
    %v672 = vadd.f32 %v636, %v661
    %v673 = vadd.f32 %v637, %v661
    %v674 = vadd.f32 %v638, %v661
    %v675 = vmax.f32 %v663, 0.0
    %v676 = vmax.f32 %v664, 0.0
    %v677 = vmax.f32 %v665, 0.0
    %v678 = vmax.f32 %v666, 0.0
    %v679 = vmax.f32 %v667, 0.0
    %v680 = vmax.f32 %v668, 0.0
    %v681 = vmax.f32 %v669, 0.0
    %v682 = vmax.f32 %v670, 0.0
    %v683 = vmax.f32 %v671, 0.0
    %v684 = vmax.f32 %v672, 0.0
    %v685 = vmax.f32 %v673, 0.0
    %v686 = vmax.f32 %v674, 0.0
    %v688 = vlaneseq
    %v689 = vshrl.u32 %v688, 7
    %v690 = vsub.s32 0, %v689
    %v691 = vrot.slane %v53, %v690
    %v692 = vlaneseq
    %v693 = vshrl.u32 %v692, 7
    %v694 = vsub.s32 1, %v693
    %v695 = vrot.slane %v53, %v694
    %v696 = vlaneseq
    %v697 = vshrl.u32 %v696, 7
    %v698 = vsub.s32 2, %v697
    %v699 = vrot.slane %v53, %v698
    %v703 = vmul.f32 %v675, %v691
    %v704 = vmul.f32 %v676, %v695
    %v705 = vmul.f32 %v677, %v699
    %v706 = vmul.f32 %v678, %v691
    %v707 = vmul.f32 %v679, %v695
    %v708 = vmul.f32 %v680, %v699
    %v709 = vmul.f32 %v681, %v691
    %v710 = vmul.f32 %v682, %v695
    %v711 = vmul.f32 %v683, %v699
    %v712 = vmul.f32 %v684, %v691
    %v713 = vmul.f32 %v685, %v695
    %v714 = vmul.f32 %v686, %v699
    %v715 = vpack.c.bf16 %v706, %v703
    %v716 = vpack.c.bf16 %v707, %v704
    %v717 = vpack.c.bf16 %v708, %v705
    %v718 = vpack.c.bf16 %v712, %v709
    %v719 = vpack.c.bf16 %v713, %v710
    %v720 = vpack.c.bf16 %v714, %v711
    %727 = vrot.lane.b32.xlu0 %v715, 127
    %v728 = vpop.permute.xlu0 %727
    %729 = vrot.lane.b32.xlu0 %v716, 127
    %v730 = vpop.permute.xlu0 %729
    %731 = vrot.lane.b32.xlu0 %v717, 127
    %v732 = vpop.permute.xlu0 %731
    %733 = vrot.lane.b32.xlu0 %v718, 127
    %v734 = vpop.permute.xlu0 %733
    %735 = vrot.lane.b32.xlu0 %v719, 127
    %v736 = vpop.permute.xlu0 %735
    %737 = vrot.lane.b32.xlu0 %v720, 127
    %v738 = vpop.permute.xlu0 %737
    %v739 = vsel %vm90, %v728, %v730
    %v740 = vsel %vm90, %v730, %v732
    %v741 = vsel %vm90, %v734, %v736
    %v742 = vsel %vm90, %v736, %v738
    %749 = vrot.lane.b32.xlu0 %v715, 126
    %v750 = vpop.permute.xlu0 %749
    %751 = vrot.lane.b32.xlu0 %v716, 126
    %v752 = vpop.permute.xlu0 %751
    %753 = vrot.lane.b32.xlu0 %v717, 126
    %v754 = vpop.permute.xlu0 %753
    %755 = vrot.lane.b32.xlu0 %v718, 126
    %v756 = vpop.permute.xlu0 %755
    %757 = vrot.lane.b32.xlu0 %v719, 126
    %v758 = vpop.permute.xlu0 %757
    %759 = vrot.lane.b32.xlu0 %v720, 126
    %v760 = vpop.permute.xlu0 %759
    %v761 = vsel %vm113, %v750, %v752
    %v762 = vsel %vm113, %v752, %v754
    %v763 = vsel %vm113, %v756, %v758
    %v764 = vsel %vm113, %v758, %v760
    %v771 = vld [vmem:[#allocation5] sm:$0xf]
    %v772 = vld [vmem:[#allocation5 + $0x4] sm:$0xf]
    %v773 = vld [vmem:[#allocation5 + $0x8] sm:$0xf]
    %v774 = vld [vmem:[#allocation5 + $0xc] sm:$0xf]
    %s775 = scalar_lea.vmem [#allocation5], 16
    %v776 = vld [vmem:[%s775] sm:$0xf]
    %v777 = vld [vmem:[%s775 + $0x4] sm:$0xf]
    %v778 = vld [vmem:[%s775 + $0x8] sm:$0xf]
    %v779 = vld [vmem:[%s775 + $0xc] sm:$0xf]
    %v784 = vunpack.c.l.b16 %v776
    %v785 = vunpack.c.l.b16 %v777
    %v786 = vunpack.c.l.b16 %v778
    %v787 = vunpack.c.l.b16 %v779
    %v788 = vpack.c.b16 %v785, %v784
    %v789 = vpack.c.b16 %v787, %v786
    %790 = vrot.lane.b32.xlu0 %v715, 110
    %v791 = vpop.permute.xlu0 %790
    %792 = vrot.lane.b32.xlu0 %v716, 110
    %v793 = vpop.permute.xlu0 %792
    %794 = vrot.lane.b32.xlu0 %v717, 110
    %v795 = vpop.permute.xlu0 %794
    %796 = vrot.lane.b32.xlu0 %v718, 110
    %v797 = vpop.permute.xlu0 %796
    %798 = vrot.lane.b32.xlu0 %v719, 110
    %v799 = vpop.permute.xlu0 %798
    %800 = vrot.lane.b32.xlu0 %v720, 110
    %v801 = vpop.permute.xlu0 %800
    %802 = vrot.lane.b32.xlu0 %v739, 110
    %v803 = vpop.permute.xlu0 %802
    %804 = vrot.lane.b32.xlu0 %v740, 110
    %v805 = vpop.permute.xlu0 %804
    %806 = vrot.lane.b32.xlu0 %v732, 110
    %v807 = vpop.permute.xlu0 %806
    %808 = vrot.lane.b32.xlu0 %v741, 110
    %v809 = vpop.permute.xlu0 %808
    %810 = vrot.lane.b32.xlu0 %v742, 110
    %v811 = vpop.permute.xlu0 %810
    %812 = vrot.lane.b32.xlu0 %v738, 110
    %v813 = vpop.permute.xlu0 %812
    %814 = vrot.lane.b32.xlu0 %v761, 110
    %v815 = vpop.permute.xlu0 %814
    %816 = vrot.lane.b32.xlu0 %v762, 110
    %v817 = vpop.permute.xlu0 %816
    %818 = vrot.lane.b32.xlu0 %v754, 110
    %v819 = vpop.permute.xlu0 %818
    %820 = vrot.lane.b32.xlu0 %v763, 110
    %v821 = vpop.permute.xlu0 %820
    %822 = vrot.lane.b32.xlu0 %v764, 110
    %v823 = vpop.permute.xlu0 %822
    %824 = vrot.lane.b32.xlu0 %v760, 110
    %v825 = vpop.permute.xlu0 %824
    %v826 = vsel %vm179, %v791, %v793
    %v827 = vsel %vm179, %v793, %v795
    %v828 = vsel %vm179, %v797, %v799
    %v829 = vsel %vm179, %v799, %v801
    %v830 = vsel %vm179, %v803, %v805
    %v831 = vsel %vm179, %v805, %v807
    %v832 = vsel %vm179, %v809, %v811
    %v833 = vsel %vm179, %v811, %v813
    %v834 = vsel %vm179, %v815, %v817
    %v835 = vsel %vm179, %v817, %v819
    %v836 = vsel %vm179, %v821, %v823
    %v837 = vsel %vm179, %v823, %v825
    %v857 = vsel %vm210, %v788, 0
    %v860 = vsel %vm210, %v789, 0
    %862 = vmatprep.subr.bf16.mxu0 %v827
    %863 = vmatpush1.bf16.msra.mxu0 %v826
    %864 = vmatprep.subr.bf16.mxu0 %v829
    %865 = vmatpush1.bf16.msra.mxu0 %v828
    %866 = vmatprep.subr.bf16.mxu0 %v831
    %867 = vmatpush1.bf16.msra.mxu0 %v830
    %868 = vmatprep.subr.bf16.mxu0 %v833
    %869 = vmatpush1.bf16.msra.mxu0 %v832
    %870 = vmatprep.subr.bf16.mxu0 %v835
    %871 = vmatpush1.bf16.msra.mxu0 %v834
    %872 = vmatprep.subr.bf16.mxu0 %v837
    %873 = vmatpush1.bf16.msra.mxu0 %v836
    %874 = vmatprep.subr.bf16.mxu0 0
    %875 = vmatpush1.bf16.msra.mxu0 0
    %876 = vmatprep.subr.bf16.mxu0 0
    %877 = vmatpush1.bf16.msra.mxu0 0
    %878 = vmatprep.subr.bf16.mxu0 0
    %879 = vmatpush1.bf16.msra.mxu0 0
    %880 = vmatprep.subr.bf16.mxu0 0
    %881 = vmatpush1.bf16.msra.mxu0 0
    %882 = vmatprep.subr.bf16.mxu0 0
    %883 = vmatpush1.bf16.msra.mxu0 0
    %884 = vmatprep.subr.bf16.mxu0 0
    %885 = vmatpush1.bf16.msra.mxu0 0
    %886 = vmatprep.subr.bf16.mxu0 0
    %887 = vmatpush1.bf16.msra.mxu0 0
    %888 = vmatprep.subr.bf16.mxu0 0
    %889 = vmatpush1.bf16.msra.mxu0 0
    %890 = vmatprep.subr.bf16.mxu0 0
    %891 = vmatpush1.bf16.msra.mxu0 0
    %892 = vmatprep.subr.bf16.mxu0 0
    %893 = vmatpush1.bf16.msra.mxu0 0
    %894 = vmatprep.mubr.bf16.mxu0 0
    %895 = vmatmul.mubr.bf16.gmra.mrb[0].mxu0 %v857
    %v896 = vpop.f32.mrb[0].mxu0
    %v897 = vadd.f32 0.0, %v896
    %v898 = vpop.f32.mrb[0].mxu0
    %v899 = vadd.f32 0.0, %v898
    %v900 = vpop.f32.mrb[0].mxu0
    %v901 = vadd.f32 0.0, %v900
    %v902 = vpop.f32.mrb[0].mxu0
    %v903 = vadd.f32 0.0, %v902
    %904 = vmatprep.mubr.bf16.mxu0 0
    %905 = vmatmul.mubr.bf16.gmra.mrb[0].mxu0 %v860
    %v906 = vpop.f32.mrb[0].mxu0
    %v907 = vadd.f32 0.0, %v906
    %v908 = vpop.f32.mrb[0].mxu0
    %v909 = vadd.f32 0.0, %v908
    %v910 = vpop.f32.mrb[0].mxu0
    %v911 = vadd.f32 0.0, %v910
    %v912 = vpop.f32.mrb[0].mxu0
    %v913 = vadd.f32 0.0, %v912
    %914 = vdwg.mxu0
    %915 = vmatprep.subr.bf16.mxu0 0
    %916 = vmatpush1.bf16.msra.mxu0 %v795
    %917 = vmatprep.subr.bf16.mxu0 0
    %918 = vmatpush1.bf16.msra.mxu0 %v801
    %919 = vmatprep.subr.bf16.mxu0 0
    %920 = vmatpush1.bf16.msra.mxu0 %v807
    %921 = vmatprep.subr.bf16.mxu0 0
    %922 = vmatpush1.bf16.msra.mxu0 %v813
    %923 = vmatprep.subr.bf16.mxu0 0
    %924 = vmatpush1.bf16.msra.mxu0 %v819
    %925 = vmatprep.subr.bf16.mxu0 0
    %926 = vmatpush1.bf16.msra.mxu0 %v825
    %927 = vmatprep.subr.bf16.mxu0 0
    %928 = vmatpush1.bf16.msra.mxu0 0
    %929 = vmatprep.subr.bf16.mxu0 0
    %930 = vmatpush1.bf16.msra.mxu0 0
    %931 = vmatprep.subr.bf16.mxu0 0
    %932 = vmatpush1.bf16.msra.mxu0 0
    %933 = vmatprep.subr.bf16.mxu0 0
    %934 = vmatpush1.bf16.msra.mxu0 0
    %935 = vmatprep.subr.bf16.mxu0 0
    %936 = vmatpush1.bf16.msra.mxu0 0
    %937 = vmatprep.subr.bf16.mxu0 0
    %938 = vmatpush1.bf16.msra.mxu0 0
    %939 = vmatprep.subr.bf16.mxu0 0
    %940 = vmatpush1.bf16.msra.mxu0 0
    %941 = vmatprep.subr.bf16.mxu0 0
    %942 = vmatpush1.bf16.msra.mxu0 0
    %943 = vmatprep.subr.bf16.mxu0 0
    %944 = vmatpush1.bf16.msra.mxu0 0
    %945 = vmatprep.subr.bf16.mxu0 0
    %946 = vmatpush1.bf16.msra.mxu0 0
    %947 = vmatprep.mubr.bf16.mxu0 0
    %948 = vmatmul.mubr.bf16.gmra.mrb[0].mxu0 %v857
    %v949 = vpop.f32.mrb[0].mxu0
    %v950 = vadd.f32 0.0, %v949
    %v951 = vpop.f32.mrb[0].mxu0
    %v952 = vpop.f32.mrb[0].mxu0
    %v953 = vadd.f32 0.0, %v952
    %v954 = vpop.f32.mrb[0].mxu0
    %955 = vmatprep.mubr.bf16.mxu0 0
    %956 = vmatmul.mubr.bf16.gmra.mrb[0].mxu0 %v860
    %v957 = vpop.f32.mrb[0].mxu0
    %v958 = vadd.f32 0.0, %v957
    %v959 = vpop.f32.mrb[0].mxu0
    %v960 = vpop.f32.mrb[0].mxu0
    %v961 = vadd.f32 0.0, %v960
    %v962 = vpop.f32.mrb[0].mxu0
    %963 = vdwg.mxu0
    %v968 = vunpack.c.l.b16 %v771
    %v969 = vunpack.c.l.b16 %v772
    %v970 = vunpack.c.l.b16 %v773
    %v971 = vunpack.c.l.b16 %v774
    %v972 = vpack.c.b16 %v969, %v968
    %v973 = vpack.c.b16 %v971, %v970
    %v975 = vsel %vm210, %v972, 0
    %v978 = vsel %vm210, %v973, 0
    %980 = vmatprep.subr.bf16.mxu0 %v716
    %981 = vmatpush1.bf16.msra.mxu0 %v715
    %982 = vmatprep.subr.bf16.mxu0 %v719
    %983 = vmatpush1.bf16.msra.mxu0 %v718
    %984 = vmatprep.subr.bf16.mxu0 %v740
    %985 = vmatpush1.bf16.msra.mxu0 %v739
    %986 = vmatprep.subr.bf16.mxu0 %v742
    %987 = vmatpush1.bf16.msra.mxu0 %v741
    %988 = vmatprep.subr.bf16.mxu0 %v762
    %989 = vmatpush1.bf16.msra.mxu0 %v761
    %990 = vmatprep.subr.bf16.mxu0 %v764
    %991 = vmatpush1.bf16.msra.mxu0 %v763
    %992 = vmatprep.subr.bf16.mxu0 0
    %993 = vmatpush1.bf16.msra.mxu0 0
    %994 = vmatprep.subr.bf16.mxu0 0
    %995 = vmatpush1.bf16.msra.mxu0 0
    %996 = vmatprep.subr.bf16.mxu0 0
    %997 = vmatpush1.bf16.msra.mxu0 0
    %998 = vmatprep.subr.bf16.mxu0 0
    %999 = vmatpush1.bf16.msra.mxu0 0
    %1000 = vmatprep.subr.bf16.mxu0 0
    %1001 = vmatpush1.bf16.msra.mxu0 0
    %1002 = vmatprep.subr.bf16.mxu0 0
    %1003 = vmatpush1.bf16.msra.mxu0 0
    %1004 = vmatprep.subr.bf16.mxu0 0
    %1005 = vmatpush1.bf16.msra.mxu0 0
    %1006 = vmatprep.subr.bf16.mxu0 0
    %1007 = vmatpush1.bf16.msra.mxu0 0
    %1008 = vmatprep.subr.bf16.mxu0 0
    %1009 = vmatpush1.bf16.msra.mxu0 0
    %1010 = vmatprep.subr.bf16.mxu0 0
    %1011 = vmatpush1.bf16.msra.mxu0 0
    %1012 = vmatprep.mubr.bf16.mxu0 0
    %1013 = vmatmul.mubr.bf16.gmra.mrb[0].mxu0 %v975
    %v1014 = vpop.f32.mrb[0].mxu0
    %v1015 = vadd.f32 %v897, %v1014
    %v1016 = vpop.f32.mrb[0].mxu0
    %v1017 = vadd.f32 %v899, %v1016
    %v1018 = vpop.f32.mrb[0].mxu0
    %v1019 = vadd.f32 %v901, %v1018
    %v1020 = vpop.f32.mrb[0].mxu0
    %v1021 = vadd.f32 %v903, %v1020
    %1022 = vmatprep.mubr.bf16.mxu0 0
    %1023 = vmatmul.mubr.bf16.gmra.mrb[0].mxu0 %v978
    %v1024 = vpop.f32.mrb[0].mxu0
    %v1025 = vadd.f32 %v907, %v1024
    %v1026 = vpop.f32.mrb[0].mxu0
    %v1027 = vadd.f32 %v909, %v1026
    %v1028 = vpop.f32.mrb[0].mxu0
    %v1029 = vadd.f32 %v911, %v1028
    %v1030 = vpop.f32.mrb[0].mxu0
    %v1031 = vadd.f32 %v913, %v1030
    %1032 = vdwg.mxu0
    %1033 = vmatprep.subr.bf16.mxu0 0
    %1034 = vmatpush1.bf16.msra.mxu0 %v717
    %1035 = vmatprep.subr.bf16.mxu0 0
    %1036 = vmatpush1.bf16.msra.mxu0 %v720
    %1037 = vmatprep.subr.bf16.mxu0 0
    %1038 = vmatpush1.bf16.msra.mxu0 %v732
    %1039 = vmatprep.subr.bf16.mxu0 0
    %1040 = vmatpush1.bf16.msra.mxu0 %v738
    %1041 = vmatprep.subr.bf16.mxu0 0
    %1042 = vmatpush1.bf16.msra.mxu0 %v754
    %1043 = vmatprep.subr.bf16.mxu0 0
    %1044 = vmatpush1.bf16.msra.mxu0 %v760
    %1045 = vmatprep.subr.bf16.mxu0 0
    %1046 = vmatpush1.bf16.msra.mxu0 0
    %1047 = vmatprep.subr.bf16.mxu0 0
    %1048 = vmatpush1.bf16.msra.mxu0 0
    %1049 = vmatprep.subr.bf16.mxu0 0
    %1050 = vmatpush1.bf16.msra.mxu0 0
    %1051 = vmatprep.subr.bf16.mxu0 0
    %1052 = vmatpush1.bf16.msra.mxu0 0
    %1053 = vmatprep.subr.bf16.mxu0 0
    %1054 = vmatpush1.bf16.msra.mxu0 0
    %1055 = vmatprep.subr.bf16.mxu0 0
    %1056 = vmatpush1.bf16.msra.mxu0 0
    %1057 = vmatprep.subr.bf16.mxu0 0
    %1058 = vmatpush1.bf16.msra.mxu0 0
    %1059 = vmatprep.subr.bf16.mxu0 0
    %1060 = vmatpush1.bf16.msra.mxu0 0
    %1061 = vmatprep.subr.bf16.mxu0 0
    %1062 = vmatpush1.bf16.msra.mxu0 0
    %1063 = vmatprep.subr.bf16.mxu0 0
    %1064 = vmatpush1.bf16.msra.mxu0 0
    %1065 = vmatprep.mubr.bf16.mxu0 0
    %1066 = vmatmul.mubr.bf16.gmra.mrb[0].mxu0 %v975
    %v1067 = vpop.f32.mrb[0].mxu0
    %v1068 = vadd.f32 %v950, %v1067
    %v1069 = vpop.f32.mrb[0].mxu0
    %v1070 = vpop.f32.mrb[0].mxu0
    %v1071 = vadd.f32 %v953, %v1070
    %v1072 = vpop.f32.mrb[0].mxu0
    %1073 = vmatprep.mubr.bf16.mxu0 0
    %1074 = vmatmul.mubr.bf16.gmra.mrb[0].mxu0 %v978
    %v1075 = vpop.f32.mrb[0].mxu0
    %v1076 = vadd.f32 %v958, %v1075
    %v1077 = vpop.f32.mrb[0].mxu0
    %v1078 = vpop.f32.mrb[0].mxu0
    %v1079 = vadd.f32 %v961, %v1078
    %v1080 = vpop.f32.mrb[0].mxu0
    %1081 = vdwg.mxu0
    %s1082 = scalar_lea.vmem [#allocation5], 32
    %v1083 = vld [vmem:[%s1082] sm:$0xf]
    %v1084 = vld [vmem:[%s1082 + $0x4] sm:$0xf]
    %v1085 = vld [vmem:[%s1082 + $0x8] sm:$0xf]
    %v1086 = vld [vmem:[%s1082 + $0xc] sm:$0xf]
    %v1091 = vunpack.c.l.b16 %v1083
    %v1092 = vunpack.c.l.b16 %v1084
    %v1093 = vunpack.c.l.b16 %v1085
    %v1094 = vunpack.c.l.b16 %v1086
    %v1095 = vpack.c.b16 %v1092, %v1091
    %v1096 = vpack.c.b16 %v1094, %v1093
    %1097 = vrot.lane.b32.xlu0 %v715, 92
    %v1098 = vpop.permute.xlu0 %1097
    %1099 = vrot.lane.b32.xlu0 %v716, 92
    %v1100 = vpop.permute.xlu0 %1099
    %1101 = vrot.lane.b32.xlu0 %v717, 92
    %v1102 = vpop.permute.xlu0 %1101
    %1103 = vrot.lane.b32.xlu0 %v718, 92
    %v1104 = vpop.permute.xlu0 %1103
    %1105 = vrot.lane.b32.xlu0 %v719, 92
    %v1106 = vpop.permute.xlu0 %1105
    %1107 = vrot.lane.b32.xlu0 %v720, 92
    %v1108 = vpop.permute.xlu0 %1107
    %1109 = vrot.lane.b32.xlu0 %v739, 92
    %v1110 = vpop.permute.xlu0 %1109
    %1111 = vrot.lane.b32.xlu0 %v740, 92
    %v1112 = vpop.permute.xlu0 %1111
    %1113 = vrot.lane.b32.xlu0 %v732, 92
    %v1114 = vpop.permute.xlu0 %1113
    %1115 = vrot.lane.b32.xlu0 %v741, 92
    %v1116 = vpop.permute.xlu0 %1115
    %1117 = vrot.lane.b32.xlu0 %v742, 92
    %v1118 = vpop.permute.xlu0 %1117
    %1119 = vrot.lane.b32.xlu0 %v738, 92
    %v1120 = vpop.permute.xlu0 %1119
    %1121 = vrot.lane.b32.xlu0 %v761, 92
    %v1122 = vpop.permute.xlu0 %1121
    %1123 = vrot.lane.b32.xlu0 %v762, 92
    %v1124 = vpop.permute.xlu0 %1123
    %1125 = vrot.lane.b32.xlu0 %v754, 92
    %v1126 = vpop.permute.xlu0 %1125
    %1127 = vrot.lane.b32.xlu0 %v763, 92
    %v1128 = vpop.permute.xlu0 %1127
    %1129 = vrot.lane.b32.xlu0 %v764, 92
    %v1130 = vpop.permute.xlu0 %1129
    %1131 = vrot.lane.b32.xlu0 %v760, 92
    %v1132 = vpop.permute.xlu0 %1131
    %v1133 = vsel %vm488, %v1098, %v1100
    %v1134 = vsel %vm488, %v1100, %v1102
    %v1135 = vsel %vm488, %v1104, %v1106
    %v1136 = vsel %vm488, %v1106, %v1108
    %v1137 = vsel %vm488, %v1110, %v1112
    %v1138 = vsel %vm488, %v1112, %v1114
    %v1139 = vsel %vm488, %v1116, %v1118
    %v1140 = vsel %vm488, %v1118, %v1120
    %v1141 = vsel %vm488, %v1122, %v1124
    %v1142 = vsel %vm488, %v1124, %v1126
    %v1143 = vsel %vm488, %v1128, %v1130
    %v1144 = vsel %vm488, %v1130, %v1132
    %v1164 = vsel %vm210, %v1095, 0
    %v1167 = vsel %vm210, %v1096, 0
    %1169 = vmatprep.subr.bf16.mxu0 %v1134
    %1170 = vmatpush1.bf16.msra.mxu0 %v1133
    %1171 = vmatprep.subr.bf16.mxu0 %v1136
    %1172 = vmatpush1.bf16.msra.mxu0 %v1135
    %1173 = vmatprep.subr.bf16.mxu0 %v1138
    %1174 = vmatpush1.bf16.msra.mxu0 %v1137
    %1175 = vmatprep.subr.bf16.mxu0 %v1140
    %1176 = vmatpush1.bf16.msra.mxu0 %v1139
    %1177 = vmatprep.subr.bf16.mxu0 %v1142
    %1178 = vmatpush1.bf16.msra.mxu0 %v1141
    %1179 = vmatprep.subr.bf16.mxu0 %v1144
    %1180 = vmatpush1.bf16.msra.mxu0 %v1143
    %1181 = vmatprep.subr.bf16.mxu0 0
    %1182 = vmatpush1.bf16.msra.mxu0 0
    %1183 = vmatprep.subr.bf16.mxu0 0
    %1184 = vmatpush1.bf16.msra.mxu0 0
    %1185 = vmatprep.subr.bf16.mxu0 0
    %1186 = vmatpush1.bf16.msra.mxu0 0
    %1187 = vmatprep.subr.bf16.mxu0 0
    %1188 = vmatpush1.bf16.msra.mxu0 0
    %1189 = vmatprep.subr.bf16.mxu0 0
    %1190 = vmatpush1.bf16.msra.mxu0 0
    %1191 = vmatprep.subr.bf16.mxu0 0
    %1192 = vmatpush1.bf16.msra.mxu0 0
    %1193 = vmatprep.subr.bf16.mxu0 0
    %1194 = vmatpush1.bf16.msra.mxu0 0
    %1195 = vmatprep.subr.bf16.mxu0 0
    %1196 = vmatpush1.bf16.msra.mxu0 0
    %1197 = vmatprep.subr.bf16.mxu0 0
    %1198 = vmatpush1.bf16.msra.mxu0 0
    %1199 = vmatprep.subr.bf16.mxu0 0
    %1200 = vmatpush1.bf16.msra.mxu0 0
    %1201 = vmatprep.mubr.bf16.mxu0 0
    %1202 = vmatmul.mubr.bf16.gmra.mrb[0].mxu0 %v1164
    %v1203 = vpop.f32.mrb[0].mxu0
    %v1204 = vadd.f32 0.0, %v1203
    %v1205 = vpop.f32.mrb[0].mxu0
    %v1206 = vadd.f32 0.0, %v1205
    %v1207 = vpop.f32.mrb[0].mxu0
    %v1208 = vadd.f32 0.0, %v1207
    %v1209 = vpop.f32.mrb[0].mxu0
    %v1210 = vadd.f32 0.0, %v1209
    %1211 = vmatprep.mubr.bf16.mxu0 0
    %1212 = vmatmul.mubr.bf16.gmra.mrb[0].mxu0 %v1167
    %v1213 = vpop.f32.mrb[0].mxu0
    %v1214 = vadd.f32 0.0, %v1213
    %v1215 = vpop.f32.mrb[0].mxu0
    %v1216 = vadd.f32 0.0, %v1215
    %v1217 = vpop.f32.mrb[0].mxu0
    %v1218 = vadd.f32 0.0, %v1217
    %v1219 = vpop.f32.mrb[0].mxu0
    %v1220 = vadd.f32 0.0, %v1219
    %1221 = vdwg.mxu0
    %1222 = vmatprep.subr.bf16.mxu0 0
    %1223 = vmatpush1.bf16.msra.mxu0 %v1102
    %1224 = vmatprep.subr.bf16.mxu0 0
    %1225 = vmatpush1.bf16.msra.mxu0 %v1108
    %1226 = vmatprep.subr.bf16.mxu0 0
    %1227 = vmatpush1.bf16.msra.mxu0 %v1114
    %1228 = vmatprep.subr.bf16.mxu0 0
    %1229 = vmatpush1.bf16.msra.mxu0 %v1120
    %1230 = vmatprep.subr.bf16.mxu0 0
    %1231 = vmatpush1.bf16.msra.mxu0 %v1126
    %1232 = vmatprep.subr.bf16.mxu0 0
    %1233 = vmatpush1.bf16.msra.mxu0 %v1132
    %1234 = vmatprep.subr.bf16.mxu0 0
    %1235 = vmatpush1.bf16.msra.mxu0 0
    %1236 = vmatprep.subr.bf16.mxu0 0
    %1237 = vmatpush1.bf16.msra.mxu0 0
    %1238 = vmatprep.subr.bf16.mxu0 0
    %1239 = vmatpush1.bf16.msra.mxu0 0
    %1240 = vmatprep.subr.bf16.mxu0 0
    %1241 = vmatpush1.bf16.msra.mxu0 0
    %1242 = vmatprep.subr.bf16.mxu0 0
    %1243 = vmatpush1.bf16.msra.mxu0 0
    %1244 = vmatprep.subr.bf16.mxu0 0
    %1245 = vmatpush1.bf16.msra.mxu0 0
    %1246 = vmatprep.subr.bf16.mxu0 0
    %1247 = vmatpush1.bf16.msra.mxu0 0
    %1248 = vmatprep.subr.bf16.mxu0 0
    %1249 = vmatpush1.bf16.msra.mxu0 0
    %1250 = vmatprep.subr.bf16.mxu0 0
    %1251 = vmatpush1.bf16.msra.mxu0 0
    %1252 = vmatprep.subr.bf16.mxu0 0
    %1253 = vmatpush1.bf16.msra.mxu0 0
    %1254 = vmatprep.mubr.bf16.mxu0 0
    %1255 = vmatmul.mubr.bf16.gmra.mrb[0].mxu0 %v1164
    %v1256 = vpop.f32.mrb[0].mxu0
    %v1257 = vadd.f32 0.0, %v1256
    %v1258 = vpop.f32.mrb[0].mxu0
    %v1259 = vpop.f32.mrb[0].mxu0
    %v1260 = vadd.f32 0.0, %v1259
    %v1261 = vpop.f32.mrb[0].mxu0
    %1262 = vmatprep.mubr.bf16.mxu0 0
    %1263 = vmatmul.mubr.bf16.gmra.mrb[0].mxu0 %v1167
    %v1264 = vpop.f32.mrb[0].mxu0
    %v1265 = vadd.f32 0.0, %v1264
    %v1266 = vpop.f32.mrb[0].mxu0
    %v1267 = vpop.f32.mrb[0].mxu0
    %v1268 = vadd.f32 0.0, %v1267
    %v1269 = vpop.f32.mrb[0].mxu0
    %1270 = vdwg.mxu0
    %v1271 = vadd.f32 %v1015, %v1204
    %v1272 = vadd.f32 %v1017, %v1206
    %v1273 = vadd.f32 %v1068, %v1257
    %v1274 = vadd.f32 %v1019, %v1208
    %v1275 = vadd.f32 %v1021, %v1210
    %v1276 = vadd.f32 %v1071, %v1260
    %v1277 = vadd.f32 %v1025, %v1214
    %v1278 = vadd.f32 %v1027, %v1216
    %v1279 = vadd.f32 %v1076, %v1265
    %v1280 = vadd.f32 %v1029, %v1218
    %v1281 = vadd.f32 %v1031, %v1220
    %v1282 = vadd.f32 %v1079, %v1268
    %v1283 = vld [vmem:[%s4] sm:$0xff]
    %v1284 = vld [vmem:[%s4 + $0x8] sm:$0xff]
    %v1285 = vld [vmem:[%s4 + $0x10] sm:$0xff]
    %v1286 = vld [vmem:[%s4 + $0x18] sm:$0xff]
    %1288 = vset.pattern.permute.xlu0 0
    %1289 = vperm.xlu0 %1288, %v1283
    %v1290 = vpop.permute.xlu0 %1289
    %1293 = vset.pattern.permute.xlu0 0
    %1294 = vperm.xlu0 %1293, %v1284
    %v1295 = vpop.permute.xlu0 %1294
    %1298 = vset.pattern.permute.xlu0 0
    %1299 = vperm.xlu0 %1298, %v1285
    %v1300 = vpop.permute.xlu0 %1299
    %1303 = vset.pattern.permute.xlu0 0
    %1304 = vperm.xlu0 %1303, %v1286
    %v1305 = vpop.permute.xlu0 %1304
    %v1307 = vadd.f32 %v1271, %v1290
    %v1308 = vadd.f32 %v1272, %v1290
    %v1309 = vadd.f32 %v1273, %v1290
    %v1310 = vadd.f32 %v1274, %v1295
    %v1311 = vadd.f32 %v1275, %v1295
    %v1312 = vadd.f32 %v1276, %v1295
    %v1313 = vadd.f32 %v1277, %v1300
    %v1314 = vadd.f32 %v1278, %v1300
    %v1315 = vadd.f32 %v1279, %v1300
    %v1316 = vadd.f32 %v1280, %v1305
    %v1317 = vadd.f32 %v1281, %v1305
    %v1318 = vadd.f32 %v1282, %v1305
    %1331 = vrot.lane.b32.xlu0 %v1307, 38
    %v1332 = vpop.permute.xlu0 %1331
    %1333 = vrot.lane.b32.xlu0 %v1308, 38
    %v1334 = vpop.permute.xlu0 %1333
    %1335 = vrot.lane.b32.xlu0 %v1309, 38
    %v1336 = vpop.permute.xlu0 %1335
    %1337 = vrot.lane.b32.xlu0 %v1310, 38
    %v1338 = vpop.permute.xlu0 %1337
    %1339 = vrot.lane.b32.xlu0 %v1311, 38
    %v1340 = vpop.permute.xlu0 %1339
    %1341 = vrot.lane.b32.xlu0 %v1312, 38
    %v1342 = vpop.permute.xlu0 %1341
    %1343 = vrot.lane.b32.xlu0 %v1313, 38
    %v1344 = vpop.permute.xlu0 %1343
    %1345 = vrot.lane.b32.xlu0 %v1314, 38
    %v1346 = vpop.permute.xlu0 %1345
    %1347 = vrot.lane.b32.xlu0 %v1315, 38
    %v1348 = vpop.permute.xlu0 %1347
    %1349 = vrot.lane.b32.xlu0 %v1316, 38
    %v1350 = vpop.permute.xlu0 %1349
    %1351 = vrot.lane.b32.xlu0 %v1317, 38
    %v1352 = vpop.permute.xlu0 %1351
    %1353 = vrot.lane.b32.xlu0 %v1318, 38
    %v1354 = vpop.permute.xlu0 %1353
    %vm1355 = vcmask 310272
    %v1356 = vsel %vm1355, %v1332, %v1334
    %v1357 = vsel %vm1355, %v1334, %v1336
    %v1358 = vsel %vm1355, %v1338, %v1340
    %v1359 = vsel %vm1355, %v1340, %v1342
    %v1360 = vsel %vm1355, %v1344, %v1346
    %v1361 = vsel %vm1355, %v1346, %v1348
    %v1362 = vsel %vm1355, %v1350, %v1352
    %v1363 = vsel %vm1355, %v1352, %v1354
    %v1376 = vadd.f32 %v54, %v1332
    %v1377 = vadd.f32 %v55, %v1356
    %v1378 = vadd.f32 %v56, %v1357
    %v1379 = vadd.f32 %v57, %v1338
    %v1380 = vadd.f32 %v58, %v1358
    %v1381 = vadd.f32 %v59, %v1359
    %v1382 = vadd.f32 %v60, %v1344
    %v1383 = vadd.f32 %v61, %v1360
    %v1384 = vadd.f32 %v62, %v1361
    %v1385 = vadd.f32 %v63, %v1350
    %v1386 = vadd.f32 %v64, %v1362
    %v1387 = vadd.f32 %v65, %v1363
    %1400 = vrot.lane.b32.xlu0 %v1376, 90
    %v1401 = vpop.permute.xlu0 %1400
    %1402 = vrot.lane.b32.xlu0 %v1377, 90
    %v1403 = vpop.permute.xlu0 %1402
    %1404 = vrot.lane.b32.xlu0 %v1378, 90
    %v1405 = vpop.permute.xlu0 %1404
    %1406 = vrot.lane.b32.xlu0 %v1379, 90
    %v1407 = vpop.permute.xlu0 %1406
    %1408 = vrot.lane.b32.xlu0 %v1380, 90
    %v1409 = vpop.permute.xlu0 %1408
    %1410 = vrot.lane.b32.xlu0 %v1381, 90
    %v1411 = vpop.permute.xlu0 %1410
    %1412 = vrot.lane.b32.xlu0 %v1382, 90
    %v1413 = vpop.permute.xlu0 %1412
    %1414 = vrot.lane.b32.xlu0 %v1383, 90
    %v1415 = vpop.permute.xlu0 %1414
    %1416 = vrot.lane.b32.xlu0 %v1384, 90
    %v1417 = vpop.permute.xlu0 %1416
    %1418 = vrot.lane.b32.xlu0 %v1385, 90
    %v1419 = vpop.permute.xlu0 %1418
    %1420 = vrot.lane.b32.xlu0 %v1386, 90
    %v1421 = vpop.permute.xlu0 %1420
    %1422 = vrot.lane.b32.xlu0 %v1387, 90
    %v1423 = vpop.permute.xlu0 %1422
    %vm1424 = vcmask 736256
    %v1425 = vsel %vm1424, %v1401, %v1403
    %v1426 = vsel %vm1424, %v1403, %v1405
    %v1427 = vsel %vm1424, %v1407, %v1409
    %v1428 = vsel %vm1424, %v1409, %v1411
    %v1429 = vsel %vm1424, %v1413, %v1415
    %v1430 = vsel %vm1424, %v1415, %v1417
    %v1431 = vsel %vm1424, %v1419, %v1421
    %v1432 = vsel %vm1424, %v1421, %v1423
    %1445 = vst [vmem:[#allocation7] sm:$0xff] %v1425
    %1446 = vst [vmem:[#allocation7 + $0x8] sm:$0xff] %v1426
    %vm1447 = vcmask 424960
    %1448 = vst.msk [vmem:[#allocation7 + $0x10] sm:$0xff] %vm1447, %v1405
    %1449 = vst [vmem:[#allocation7 + $0x18] sm:$0xff] %v1427
    %1450 = vst [vmem:[#allocation7 + $0x20] sm:$0xff] %v1428
    %1451 = vst.msk [vmem:[#allocation7 + $0x28] sm:$0xff] %vm1447, %v1411
    %1452 = vst [vmem:[#allocation7 + $0x30] sm:$0xff] %v1429
    %1453 = vst [vmem:[#allocation7 + $0x38] sm:$0xff] %v1430
    %1454 = vst.msk [vmem:[#allocation7 + $0x40] sm:$0xff] %vm1447, %v1417
    %1455 = vst [vmem:[#allocation7 + $0x48] sm:$0xff] %v1431
    %1456 = vst [vmem:[#allocation7 + $0x50] sm:$0xff] %v1432
    %1457 = vst.msk [vmem:[#allocation7 + $0x58] sm:$0xff] %vm1447, %v1423
    %s1458 = scalar_lea.vmem [#allocation2], 96
    %v1459 = vld [vmem:[%s1458] sm:$0xff]
    %v1460 = vld [vmem:[%s1458 + $0x8] sm:$0xff]
    %v1461 = vld [vmem:[%s1458 + $0x10] sm:$0xff]
    %v1462 = vld [vmem:[%s1458 + $0x18] sm:$0xff]
    %v1463 = vld [vmem:[%s1458 + $0x20] sm:$0xff]
    %v1464 = vld [vmem:[%s1458 + $0x28] sm:$0xff]
    %v1465 = vld [vmem:[%s1458 + $0x30] sm:$0xff]
    %v1466 = vld [vmem:[%s1458 + $0x38] sm:$0xff]
    %v1467 = vld [vmem:[%s1458 + $0x40] sm:$0xff]
    %v1468 = vld [vmem:[%s1458 + $0x48] sm:$0xff]
    %v1469 = vld [vmem:[%s1458 + $0x50] sm:$0xff]
    %v1470 = vld [vmem:[%s1458 + $0x58] sm:$0xff]
    %v1471 = vpack.c.bf16 %v1462, %v1459
    %v1472 = vpack.c.bf16 %v1463, %v1460
    %v1473 = vpack.c.bf16 %v1464, %v1461
    %v1474 = vpack.c.bf16 %v1468, %v1465
    %v1475 = vpack.c.bf16 %v1469, %v1466
    %v1476 = vpack.c.bf16 %v1470, %v1467
    %1483 = vrot.lane.b32.xlu0 %v1471, 127
    %v1484 = vpop.permute.xlu0 %1483
    %1485 = vrot.lane.b32.xlu0 %v1472, 127
    %v1486 = vpop.permute.xlu0 %1485
    %1487 = vrot.lane.b32.xlu0 %v1473, 127
    %v1488 = vpop.permute.xlu0 %1487
    %1489 = vrot.lane.b32.xlu0 %v1474, 127
    %v1490 = vpop.permute.xlu0 %1489
    %1491 = vrot.lane.b32.xlu0 %v1475, 127
    %v1492 = vpop.permute.xlu0 %1491
    %1493 = vrot.lane.b32.xlu0 %v1476, 127
    %v1494 = vpop.permute.xlu0 %1493
    %v1495 = vsel %vm90, %v1484, %v1486
    %v1496 = vsel %vm90, %v1486, %v1488
    %v1497 = vsel %vm90, %v1490, %v1492
    %v1498 = vsel %vm90, %v1492, %v1494
    %1505 = vrot.lane.b32.xlu0 %v1471, 126
    %v1506 = vpop.permute.xlu0 %1505
    %1507 = vrot.lane.b32.xlu0 %v1472, 126
    %v1508 = vpop.permute.xlu0 %1507
    %1509 = vrot.lane.b32.xlu0 %v1473, 126
    %v1510 = vpop.permute.xlu0 %1509
    %1511 = vrot.lane.b32.xlu0 %v1474, 126
    %v1512 = vpop.permute.xlu0 %1511
    %1513 = vrot.lane.b32.xlu0 %v1475, 126
    %v1514 = vpop.permute.xlu0 %1513
    %1515 = vrot.lane.b32.xlu0 %v1476, 126
    %v1516 = vpop.permute.xlu0 %1515
    %v1517 = vsel %vm113, %v1506, %v1508
    %v1518 = vsel %vm113, %v1508, %v1510
    %v1519 = vsel %vm113, %v1512, %v1514
    %v1520 = vsel %vm113, %v1514, %v1516
    %v1527 = vld [vmem:[%s1] sm:$0xf]
    %v1528 = vld [vmem:[%s1 + $0x4] sm:$0xf]
    %v1529 = vld [vmem:[%s1 + $0x8] sm:$0xf]
    %v1530 = vld [vmem:[%s1 + $0xc] sm:$0xf]
    %v1531 = vld [vmem:[%s128] sm:$0xf]
    %v1532 = vld [vmem:[%s128 + $0x4] sm:$0xf]
    %v1533 = vld [vmem:[%s128 + $0x8] sm:$0xf]
    %v1534 = vld [vmem:[%s128 + $0xc] sm:$0xf]
    %v1539 = vunpack.c.l.b16 %v1531
    %v1540 = vunpack.c.l.b16 %v1532
    %v1541 = vunpack.c.l.b16 %v1533
    %v1542 = vunpack.c.l.b16 %v1534
    %v1543 = vpack.c.b16 %v1540, %v1539
    %v1544 = vpack.c.b16 %v1542, %v1541
    %1545 = vrot.lane.b32.xlu0 %v1471, 110
    %v1546 = vpop.permute.xlu0 %1545
    %1547 = vrot.lane.b32.xlu0 %v1472, 110
    %v1548 = vpop.permute.xlu0 %1547
    %1549 = vrot.lane.b32.xlu0 %v1473, 110
    %v1550 = vpop.permute.xlu0 %1549
    %1551 = vrot.lane.b32.xlu0 %v1474, 110
    %v1552 = vpop.permute.xlu0 %1551
    %1553 = vrot.lane.b32.xlu0 %v1475, 110
    %v1554 = vpop.permute.xlu0 %1553
    %1555 = vrot.lane.b32.xlu0 %v1476, 110
    %v1556 = vpop.permute.xlu0 %1555
    %1557 = vrot.lane.b32.xlu0 %v1495, 110
    %v1558 = vpop.permute.xlu0 %1557
    %1559 = vrot.lane.b32.xlu0 %v1496, 110
    %v1560 = vpop.permute.xlu0 %1559
    %1561 = vrot.lane.b32.xlu0 %v1488, 110
    %v1562 = vpop.permute.xlu0 %1561
    %1563 = vrot.lane.b32.xlu0 %v1497, 110
    %v1564 = vpop.permute.xlu0 %1563
    %1565 = vrot.lane.b32.xlu0 %v1498, 110
    %v1566 = vpop.permute.xlu0 %1565
    %1567 = vrot.lane.b32.xlu0 %v1494, 110
    %v1568 = vpop.permute.xlu0 %1567
    %1569 = vrot.lane.b32.xlu0 %v1517, 110
    %v1570 = vpop.permute.xlu0 %1569
    %1571 = vrot.lane.b32.xlu0 %v1518, 110
    %v1572 = vpop.permute.xlu0 %1571
    %1573 = vrot.lane.b32.xlu0 %v1510, 110
    %v1574 = vpop.permute.xlu0 %1573
    %1575 = vrot.lane.b32.xlu0 %v1519, 110
    %v1576 = vpop.permute.xlu0 %1575
    %1577 = vrot.lane.b32.xlu0 %v1520, 110
    %v1578 = vpop.permute.xlu0 %1577
    %1579 = vrot.lane.b32.xlu0 %v1516, 110
    %v1580 = vpop.permute.xlu0 %1579
    %v1581 = vsel %vm179, %v1546, %v1548
    %v1582 = vsel %vm179, %v1548, %v1550
    %v1583 = vsel %vm179, %v1552, %v1554
    %v1584 = vsel %vm179, %v1554, %v1556
    %v1585 = vsel %vm179, %v1558, %v1560
    %v1586 = vsel %vm179, %v1560, %v1562
    %v1587 = vsel %vm179, %v1564, %v1566
    %v1588 = vsel %vm179, %v1566, %v1568
    %v1589 = vsel %vm179, %v1570, %v1572
    %v1590 = vsel %vm179, %v1572, %v1574
    %v1591 = vsel %vm179, %v1576, %v1578
    %v1592 = vsel %vm179, %v1578, %v1580
    %v1612 = vsel %vm210, %v1543, 0
    %v1615 = vsel %vm210, %v1544, 0
    %1617 = vmatprep.subr.bf16.mxu0 %v1582
    %1618 = vmatpush1.bf16.msra.mxu0 %v1581
    %1619 = vmatprep.subr.bf16.mxu0 %v1584
    %1620 = vmatpush1.bf16.msra.mxu0 %v1583
    %1621 = vmatprep.subr.bf16.mxu0 %v1586
    %1622 = vmatpush1.bf16.msra.mxu0 %v1585
    %1623 = vmatprep.subr.bf16.mxu0 %v1588
    %1624 = vmatpush1.bf16.msra.mxu0 %v1587
    %1625 = vmatprep.subr.bf16.mxu0 %v1590
    %1626 = vmatpush1.bf16.msra.mxu0 %v1589
    %1627 = vmatprep.subr.bf16.mxu0 %v1592
    %1628 = vmatpush1.bf16.msra.mxu0 %v1591
    %1629 = vmatprep.subr.bf16.mxu0 0
    %1630 = vmatpush1.bf16.msra.mxu0 0
    %1631 = vmatprep.subr.bf16.mxu0 0
    %1632 = vmatpush1.bf16.msra.mxu0 0
    %1633 = vmatprep.subr.bf16.mxu0 0
    %1634 = vmatpush1.bf16.msra.mxu0 0
    %1635 = vmatprep.subr.bf16.mxu0 0
    %1636 = vmatpush1.bf16.msra.mxu0 0
    %1637 = vmatprep.subr.bf16.mxu0 0
    %1638 = vmatpush1.bf16.msra.mxu0 0
    %1639 = vmatprep.subr.bf16.mxu0 0
    %1640 = vmatpush1.bf16.msra.mxu0 0
    %1641 = vmatprep.subr.bf16.mxu0 0
    %1642 = vmatpush1.bf16.msra.mxu0 0
    %1643 = vmatprep.subr.bf16.mxu0 0
    %1644 = vmatpush1.bf16.msra.mxu0 0
    %1645 = vmatprep.subr.bf16.mxu0 0
    %1646 = vmatpush1.bf16.msra.mxu0 0
    %1647 = vmatprep.subr.bf16.mxu0 0
    %1648 = vmatpush1.bf16.msra.mxu0 0
    %1649 = vmatprep.mubr.bf16.mxu0 0
    %1650 = vmatmul.mubr.bf16.gmra.mrb[0].mxu0 %v1612
    %v1651 = vpop.f32.mrb[0].mxu0
    %v1652 = vadd.f32 0.0, %v1651
    %v1653 = vpop.f32.mrb[0].mxu0
    %v1654 = vadd.f32 0.0, %v1653
    %v1655 = vpop.f32.mrb[0].mxu0
    %v1656 = vadd.f32 0.0, %v1655
    %v1657 = vpop.f32.mrb[0].mxu0
    %v1658 = vadd.f32 0.0, %v1657
    %1659 = vmatprep.mubr.bf16.mxu0 0
    %1660 = vmatmul.mubr.bf16.gmra.mrb[0].mxu0 %v1615
    %v1661 = vpop.f32.mrb[0].mxu0
    %v1662 = vadd.f32 0.0, %v1661
    %v1663 = vpop.f32.mrb[0].mxu0
    %v1664 = vadd.f32 0.0, %v1663
    %v1665 = vpop.f32.mrb[0].mxu0
    %v1666 = vadd.f32 0.0, %v1665
    %v1667 = vpop.f32.mrb[0].mxu0
    %v1668 = vadd.f32 0.0, %v1667
    %1669 = vdwg.mxu0
    %1670 = vmatprep.subr.bf16.mxu0 0
    %1671 = vmatpush1.bf16.msra.mxu0 %v1550
    %1672 = vmatprep.subr.bf16.mxu0 0
    %1673 = vmatpush1.bf16.msra.mxu0 %v1556
    %1674 = vmatprep.subr.bf16.mxu0 0
    %1675 = vmatpush1.bf16.msra.mxu0 %v1562
    %1676 = vmatprep.subr.bf16.mxu0 0
    %1677 = vmatpush1.bf16.msra.mxu0 %v1568
    %1678 = vmatprep.subr.bf16.mxu0 0
    %1679 = vmatpush1.bf16.msra.mxu0 %v1574
    %1680 = vmatprep.subr.bf16.mxu0 0
    %1681 = vmatpush1.bf16.msra.mxu0 %v1580
    %1682 = vmatprep.subr.bf16.mxu0 0
    %1683 = vmatpush1.bf16.msra.mxu0 0
    %1684 = vmatprep.subr.bf16.mxu0 0
    %1685 = vmatpush1.bf16.msra.mxu0 0
    %1686 = vmatprep.subr.bf16.mxu0 0
    %1687 = vmatpush1.bf16.msra.mxu0 0
    %1688 = vmatprep.subr.bf16.mxu0 0
    %1689 = vmatpush1.bf16.msra.mxu0 0
    %1690 = vmatprep.subr.bf16.mxu0 0
    %1691 = vmatpush1.bf16.msra.mxu0 0
    %1692 = vmatprep.subr.bf16.mxu0 0
    %1693 = vmatpush1.bf16.msra.mxu0 0
    %1694 = vmatprep.subr.bf16.mxu0 0
    %1695 = vmatpush1.bf16.msra.mxu0 0
    %1696 = vmatprep.subr.bf16.mxu0 0
    %1697 = vmatpush1.bf16.msra.mxu0 0
    %1698 = vmatprep.subr.bf16.mxu0 0
    %1699 = vmatpush1.bf16.msra.mxu0 0
    %1700 = vmatprep.subr.bf16.mxu0 0
    %1701 = vmatpush1.bf16.msra.mxu0 0
    %1702 = vmatprep.mubr.bf16.mxu0 0
    %1703 = vmatmul.mubr.bf16.gmra.mrb[0].mxu0 %v1612
    %v1704 = vpop.f32.mrb[0].mxu0
    %v1705 = vadd.f32 0.0, %v1704
    %v1706 = vpop.f32.mrb[0].mxu0
    %v1707 = vpop.f32.mrb[0].mxu0
    %v1708 = vadd.f32 0.0, %v1707
    %v1709 = vpop.f32.mrb[0].mxu0
    %1710 = vmatprep.mubr.bf16.mxu0 0
    %1711 = vmatmul.mubr.bf16.gmra.mrb[0].mxu0 %v1615
    %v1712 = vpop.f32.mrb[0].mxu0
    %v1713 = vadd.f32 0.0, %v1712
    %v1714 = vpop.f32.mrb[0].mxu0
    %v1715 = vpop.f32.mrb[0].mxu0
    %v1716 = vadd.f32 0.0, %v1715
    %v1717 = vpop.f32.mrb[0].mxu0
    %1718 = vdwg.mxu0
    %v1723 = vunpack.c.l.b16 %v1527
    %v1724 = vunpack.c.l.b16 %v1528
    %v1725 = vunpack.c.l.b16 %v1529
    %v1726 = vunpack.c.l.b16 %v1530
    %v1727 = vpack.c.b16 %v1724, %v1723
    %v1728 = vpack.c.b16 %v1726, %v1725
    %v1730 = vsel %vm210, %v1727, 0
    %v1733 = vsel %vm210, %v1728, 0
    %1735 = vmatprep.subr.bf16.mxu0 %v1472
    %1736 = vmatpush1.bf16.msra.mxu0 %v1471
    %1737 = vmatprep.subr.bf16.mxu0 %v1475
    %1738 = vmatpush1.bf16.msra.mxu0 %v1474
    %1739 = vmatprep.subr.bf16.mxu0 %v1496
    %1740 = vmatpush1.bf16.msra.mxu0 %v1495
    %1741 = vmatprep.subr.bf16.mxu0 %v1498
    %1742 = vmatpush1.bf16.msra.mxu0 %v1497
    %1743 = vmatprep.subr.bf16.mxu0 %v1518
    %1744 = vmatpush1.bf16.msra.mxu0 %v1517
    %1745 = vmatprep.subr.bf16.mxu0 %v1520
    %1746 = vmatpush1.bf16.msra.mxu0 %v1519
    %1747 = vmatprep.subr.bf16.mxu0 0
    %1748 = vmatpush1.bf16.msra.mxu0 0
    %1749 = vmatprep.subr.bf16.mxu0 0
    %1750 = vmatpush1.bf16.msra.mxu0 0
    %1751 = vmatprep.subr.bf16.mxu0 0
    %1752 = vmatpush1.bf16.msra.mxu0 0
    %1753 = vmatprep.subr.bf16.mxu0 0
    %1754 = vmatpush1.bf16.msra.mxu0 0
    %1755 = vmatprep.subr.bf16.mxu0 0
    %1756 = vmatpush1.bf16.msra.mxu0 0
    %1757 = vmatprep.subr.bf16.mxu0 0
    %1758 = vmatpush1.bf16.msra.mxu0 0
    %1759 = vmatprep.subr.bf16.mxu0 0
    %1760 = vmatpush1.bf16.msra.mxu0 0
    %1761 = vmatprep.subr.bf16.mxu0 0
    %1762 = vmatpush1.bf16.msra.mxu0 0
    %1763 = vmatprep.subr.bf16.mxu0 0
    %1764 = vmatpush1.bf16.msra.mxu0 0
    %1765 = vmatprep.subr.bf16.mxu0 0
    %1766 = vmatpush1.bf16.msra.mxu0 0
    %1767 = vmatprep.mubr.bf16.mxu0 0
    %1768 = vmatmul.mubr.bf16.gmra.mrb[0].mxu0 %v1730
    %v1769 = vpop.f32.mrb[0].mxu0
    %v1770 = vadd.f32 %v1652, %v1769
    %v1771 = vpop.f32.mrb[0].mxu0
    %v1772 = vadd.f32 %v1654, %v1771
    %v1773 = vpop.f32.mrb[0].mxu0
    %v1774 = vadd.f32 %v1656, %v1773
    %v1775 = vpop.f32.mrb[0].mxu0
    %v1776 = vadd.f32 %v1658, %v1775
    %1777 = vmatprep.mubr.bf16.mxu0 0
    %1778 = vmatmul.mubr.bf16.gmra.mrb[0].mxu0 %v1733
    %v1779 = vpop.f32.mrb[0].mxu0
    %v1780 = vadd.f32 %v1662, %v1779
    %v1781 = vpop.f32.mrb[0].mxu0
    %v1782 = vadd.f32 %v1664, %v1781
    %v1783 = vpop.f32.mrb[0].mxu0
    %v1784 = vadd.f32 %v1666, %v1783
    %v1785 = vpop.f32.mrb[0].mxu0
    %v1786 = vadd.f32 %v1668, %v1785
    %1787 = vdwg.mxu0
    %1788 = vmatprep.subr.bf16.mxu0 0
    %1789 = vmatpush1.bf16.msra.mxu0 %v1473
    %1790 = vmatprep.subr.bf16.mxu0 0
    %1791 = vmatpush1.bf16.msra.mxu0 %v1476
    %1792 = vmatprep.subr.bf16.mxu0 0
    %1793 = vmatpush1.bf16.msra.mxu0 %v1488
    %1794 = vmatprep.subr.bf16.mxu0 0
    %1795 = vmatpush1.bf16.msra.mxu0 %v1494
    %1796 = vmatprep.subr.bf16.mxu0 0
    %1797 = vmatpush1.bf16.msra.mxu0 %v1510
    %1798 = vmatprep.subr.bf16.mxu0 0
    %1799 = vmatpush1.bf16.msra.mxu0 %v1516
    %1800 = vmatprep.subr.bf16.mxu0 0
    %1801 = vmatpush1.bf16.msra.mxu0 0
    %1802 = vmatprep.subr.bf16.mxu0 0
    %1803 = vmatpush1.bf16.msra.mxu0 0
    %1804 = vmatprep.subr.bf16.mxu0 0
    %1805 = vmatpush1.bf16.msra.mxu0 0
    %1806 = vmatprep.subr.bf16.mxu0 0
    %1807 = vmatpush1.bf16.msra.mxu0 0
    %1808 = vmatprep.subr.bf16.mxu0 0
    %1809 = vmatpush1.bf16.msra.mxu0 0
    %1810 = vmatprep.subr.bf16.mxu0 0
    %1811 = vmatpush1.bf16.msra.mxu0 0
    %1812 = vmatprep.subr.bf16.mxu0 0
    %1813 = vmatpush1.bf16.msra.mxu0 0
    %1814 = vmatprep.subr.bf16.mxu0 0
    %1815 = vmatpush1.bf16.msra.mxu0 0
    %1816 = vmatprep.subr.bf16.mxu0 0
    %1817 = vmatpush1.bf16.msra.mxu0 0
    %1818 = vmatprep.subr.bf16.mxu0 0
    %1819 = vmatpush1.bf16.msra.mxu0 0
    %1820 = vmatprep.mubr.bf16.mxu0 0
    %1821 = vmatmul.mubr.bf16.gmra.mrb[0].mxu0 %v1730
    %v1822 = vpop.f32.mrb[0].mxu0
    %v1823 = vadd.f32 %v1705, %v1822
    %v1824 = vpop.f32.mrb[0].mxu0
    %v1825 = vpop.f32.mrb[0].mxu0
    %v1826 = vadd.f32 %v1708, %v1825
    %v1827 = vpop.f32.mrb[0].mxu0
    %1828 = vmatprep.mubr.bf16.mxu0 0
    %1829 = vmatmul.mubr.bf16.gmra.mrb[0].mxu0 %v1733
    %v1830 = vpop.f32.mrb[0].mxu0
    %v1831 = vadd.f32 %v1713, %v1830
    %v1832 = vpop.f32.mrb[0].mxu0
    %v1833 = vpop.f32.mrb[0].mxu0
    %v1834 = vadd.f32 %v1716, %v1833
    %v1835 = vpop.f32.mrb[0].mxu0
    %1836 = vdwg.mxu0
    %v1837 = vld [vmem:[%s437] sm:$0xf]
    %v1838 = vld [vmem:[%s437 + $0x4] sm:$0xf]
    %v1839 = vld [vmem:[%s437 + $0x8] sm:$0xf]
    %v1840 = vld [vmem:[%s437 + $0xc] sm:$0xf]
    %v1845 = vunpack.c.l.b16 %v1837
    %v1846 = vunpack.c.l.b16 %v1838
    %v1847 = vunpack.c.l.b16 %v1839
    %v1848 = vunpack.c.l.b16 %v1840
    %v1849 = vpack.c.b16 %v1846, %v1845
    %v1850 = vpack.c.b16 %v1848, %v1847
    %1851 = vrot.lane.b32.xlu0 %v1471, 92
    %v1852 = vpop.permute.xlu0 %1851
    %1853 = vrot.lane.b32.xlu0 %v1472, 92
    %v1854 = vpop.permute.xlu0 %1853
    %1855 = vrot.lane.b32.xlu0 %v1473, 92
    %v1856 = vpop.permute.xlu0 %1855
    %1857 = vrot.lane.b32.xlu0 %v1474, 92
    %v1858 = vpop.permute.xlu0 %1857
    %1859 = vrot.lane.b32.xlu0 %v1475, 92
    %v1860 = vpop.permute.xlu0 %1859
    %1861 = vrot.lane.b32.xlu0 %v1476, 92
    %v1862 = vpop.permute.xlu0 %1861
    %1863 = vrot.lane.b32.xlu0 %v1495, 92
    %v1864 = vpop.permute.xlu0 %1863
    %1865 = vrot.lane.b32.xlu0 %v1496, 92
    %v1866 = vpop.permute.xlu0 %1865
    %1867 = vrot.lane.b32.xlu0 %v1488, 92
    %v1868 = vpop.permute.xlu0 %1867
    %1869 = vrot.lane.b32.xlu0 %v1497, 92
    %v1870 = vpop.permute.xlu0 %1869
    %1871 = vrot.lane.b32.xlu0 %v1498, 92
    %v1872 = vpop.permute.xlu0 %1871
    %1873 = vrot.lane.b32.xlu0 %v1494, 92
    %v1874 = vpop.permute.xlu0 %1873
    %1875 = vrot.lane.b32.xlu0 %v1517, 92
    %v1876 = vpop.permute.xlu0 %1875
    %1877 = vrot.lane.b32.xlu0 %v1518, 92
    %v1878 = vpop.permute.xlu0 %1877
    %1879 = vrot.lane.b32.xlu0 %v1510, 92
    %v1880 = vpop.permute.xlu0 %1879
    %1881 = vrot.lane.b32.xlu0 %v1519, 92
    %v1882 = vpop.permute.xlu0 %1881
    %1883 = vrot.lane.b32.xlu0 %v1520, 92
    %v1884 = vpop.permute.xlu0 %1883
    %1885 = vrot.lane.b32.xlu0 %v1516, 92
    %v1886 = vpop.permute.xlu0 %1885
    %v1887 = vsel %vm488, %v1852, %v1854
    %v1888 = vsel %vm488, %v1854, %v1856
    %v1889 = vsel %vm488, %v1858, %v1860
    %v1890 = vsel %vm488, %v1860, %v1862
    %v1891 = vsel %vm488, %v1864, %v1866
    %v1892 = vsel %vm488, %v1866, %v1868
    %v1893 = vsel %vm488, %v1870, %v1872
    %v1894 = vsel %vm488, %v1872, %v1874
    %v1895 = vsel %vm488, %v1876, %v1878
    %v1896 = vsel %vm488, %v1878, %v1880
    %v1897 = vsel %vm488, %v1882, %v1884
    %v1898 = vsel %vm488, %v1884, %v1886
    %v1918 = vsel %vm210, %v1849, 0
    %v1921 = vsel %vm210, %v1850, 0
    %1923 = vmatprep.subr.bf16.mxu0 %v1888
    %1924 = vmatpush1.bf16.msra.mxu0 %v1887
    %1925 = vmatprep.subr.bf16.mxu0 %v1890
    %1926 = vmatpush1.bf16.msra.mxu0 %v1889
    %1927 = vmatprep.subr.bf16.mxu0 %v1892
    %1928 = vmatpush1.bf16.msra.mxu0 %v1891
    %1929 = vmatprep.subr.bf16.mxu0 %v1894
    %1930 = vmatpush1.bf16.msra.mxu0 %v1893
    %1931 = vmatprep.subr.bf16.mxu0 %v1896
    %1932 = vmatpush1.bf16.msra.mxu0 %v1895
    %1933 = vmatprep.subr.bf16.mxu0 %v1898
    %1934 = vmatpush1.bf16.msra.mxu0 %v1897
    %1935 = vmatprep.subr.bf16.mxu0 0
    %1936 = vmatpush1.bf16.msra.mxu0 0
    %1937 = vmatprep.subr.bf16.mxu0 0
    %1938 = vmatpush1.bf16.msra.mxu0 0
    %1939 = vmatprep.subr.bf16.mxu0 0
    %1940 = vmatpush1.bf16.msra.mxu0 0
    %1941 = vmatprep.subr.bf16.mxu0 0
    %1942 = vmatpush1.bf16.msra.mxu0 0
    %1943 = vmatprep.subr.bf16.mxu0 0
    %1944 = vmatpush1.bf16.msra.mxu0 0
    %1945 = vmatprep.subr.bf16.mxu0 0
    %1946 = vmatpush1.bf16.msra.mxu0 0
    %1947 = vmatprep.subr.bf16.mxu0 0
    %1948 = vmatpush1.bf16.msra.mxu0 0
    %1949 = vmatprep.subr.bf16.mxu0 0
    %1950 = vmatpush1.bf16.msra.mxu0 0
    %1951 = vmatprep.subr.bf16.mxu0 0
    %1952 = vmatpush1.bf16.msra.mxu0 0
    %1953 = vmatprep.subr.bf16.mxu0 0
    %1954 = vmatpush1.bf16.msra.mxu0 0
    %1955 = vmatprep.mubr.bf16.mxu0 0
    %1956 = vmatmul.mubr.bf16.gmra.mrb[0].mxu0 %v1918
    %v1957 = vpop.f32.mrb[0].mxu0
    %v1958 = vadd.f32 0.0, %v1957
    %v1959 = vpop.f32.mrb[0].mxu0
    %v1960 = vadd.f32 0.0, %v1959
    %v1961 = vpop.f32.mrb[0].mxu0
    %v1962 = vadd.f32 0.0, %v1961
    %v1963 = vpop.f32.mrb[0].mxu0
    %v1964 = vadd.f32 0.0, %v1963
    %1965 = vmatprep.mubr.bf16.mxu0 0
    %1966 = vmatmul.mubr.bf16.gmra.mrb[0].mxu0 %v1921
    %v1967 = vpop.f32.mrb[0].mxu0
    %v1968 = vadd.f32 0.0, %v1967
    %v1969 = vpop.f32.mrb[0].mxu0
    %v1970 = vadd.f32 0.0, %v1969
    %v1971 = vpop.f32.mrb[0].mxu0
    %v1972 = vadd.f32 0.0, %v1971
    %v1973 = vpop.f32.mrb[0].mxu0
    %v1974 = vadd.f32 0.0, %v1973
    %1975 = vdwg.mxu0
    %1976 = vmatprep.subr.bf16.mxu0 0
    %1977 = vmatpush1.bf16.msra.mxu0 %v1856
    %1978 = vmatprep.subr.bf16.mxu0 0
    %1979 = vmatpush1.bf16.msra.mxu0 %v1862
    %1980 = vmatprep.subr.bf16.mxu0 0
    %1981 = vmatpush1.bf16.msra.mxu0 %v1868
    %1982 = vmatprep.subr.bf16.mxu0 0
    %1983 = vmatpush1.bf16.msra.mxu0 %v1874
    %1984 = vmatprep.subr.bf16.mxu0 0
    %1985 = vmatpush1.bf16.msra.mxu0 %v1880
    %1986 = vmatprep.subr.bf16.mxu0 0
    %1987 = vmatpush1.bf16.msra.mxu0 %v1886
    %1988 = vmatprep.subr.bf16.mxu0 0
    %1989 = vmatpush1.bf16.msra.mxu0 0
    %1990 = vmatprep.subr.bf16.mxu0 0
    %1991 = vmatpush1.bf16.msra.mxu0 0
    %1992 = vmatprep.subr.bf16.mxu0 0
    %1993 = vmatpush1.bf16.msra.mxu0 0
    %1994 = vmatprep.subr.bf16.mxu0 0
    %1995 = vmatpush1.bf16.msra.mxu0 0
    %1996 = vmatprep.subr.bf16.mxu0 0
    %1997 = vmatpush1.bf16.msra.mxu0 0
    %1998 = vmatprep.subr.bf16.mxu0 0
    %1999 = vmatpush1.bf16.msra.mxu0 0
    %2000 = vmatprep.subr.bf16.mxu0 0
    %2001 = vmatpush1.bf16.msra.mxu0 0
    %2002 = vmatprep.subr.bf16.mxu0 0
    %2003 = vmatpush1.bf16.msra.mxu0 0
    %2004 = vmatprep.subr.bf16.mxu0 0
    %2005 = vmatpush1.bf16.msra.mxu0 0
    %2006 = vmatprep.subr.bf16.mxu0 0
    %2007 = vmatpush1.bf16.msra.mxu0 0
    %2008 = vmatprep.mubr.bf16.mxu0 0
    %2009 = vmatmul.mubr.bf16.gmra.mrb[0].mxu0 %v1918
    %v2010 = vpop.f32.mrb[0].mxu0
    %v2011 = vadd.f32 0.0, %v2010
    %v2012 = vpop.f32.mrb[0].mxu0
    %v2013 = vpop.f32.mrb[0].mxu0
    %v2014 = vadd.f32 0.0, %v2013
    %v2015 = vpop.f32.mrb[0].mxu0
    %2016 = vmatprep.mubr.bf16.mxu0 0
    %2017 = vmatmul.mubr.bf16.gmra.mrb[0].mxu0 %v1921
    %v2018 = vpop.f32.mrb[0].mxu0
    %v2019 = vadd.f32 0.0, %v2018
    %v2020 = vpop.f32.mrb[0].mxu0
    %v2021 = vpop.f32.mrb[0].mxu0
    %v2022 = vadd.f32 0.0, %v2021
    %v2023 = vpop.f32.mrb[0].mxu0
    %2024 = vdwg.mxu0
    %v2025 = vadd.f32 %v1770, %v1958
    %v2026 = vadd.f32 %v1772, %v1960
    %v2027 = vadd.f32 %v1823, %v2011
    %v2028 = vadd.f32 %v1774, %v1962
    %v2029 = vadd.f32 %v1776, %v1964
    %v2030 = vadd.f32 %v1826, %v2014
    %v2031 = vadd.f32 %v1780, %v1968
    %v2032 = vadd.f32 %v1782, %v1970
    %v2033 = vadd.f32 %v1831, %v2019
    %v2034 = vadd.f32 %v1784, %v1972
    %v2035 = vadd.f32 %v1786, %v1974
    %v2036 = vadd.f32 %v1834, %v2022
    %v2037 = vld [vmem:[%s2] sm:$0xff]
    %v2038 = vld [vmem:[%s2 + $0x8] sm:$0xff]
    %v2039 = vld [vmem:[%s2 + $0x10] sm:$0xff]
    %v2040 = vld [vmem:[%s2 + $0x18] sm:$0xff]
    %2042 = vset.pattern.permute.xlu0 0
    %2043 = vperm.xlu0 %2042, %v2037
    %v2044 = vpop.permute.xlu0 %2043
    %2047 = vset.pattern.permute.xlu0 0
    %2048 = vperm.xlu0 %2047, %v2038
    %v2049 = vpop.permute.xlu0 %2048
    %2052 = vset.pattern.permute.xlu0 0
    %2053 = vperm.xlu0 %2052, %v2039
    %v2054 = vpop.permute.xlu0 %2053
    %2057 = vset.pattern.permute.xlu0 0
    %2058 = vperm.xlu0 %2057, %v2040
    %v2059 = vpop.permute.xlu0 %2058
    %v2061 = vadd.f32 %v2025, %v2044
    %v2062 = vadd.f32 %v2026, %v2044
    %v2063 = vadd.f32 %v2027, %v2044
    %v2064 = vadd.f32 %v2028, %v2049
    %v2065 = vadd.f32 %v2029, %v2049
    %v2066 = vadd.f32 %v2030, %v2049
    %v2067 = vadd.f32 %v2031, %v2054
    %v2068 = vadd.f32 %v2032, %v2054
    %v2069 = vadd.f32 %v2033, %v2054
    %v2070 = vadd.f32 %v2034, %v2059
    %v2071 = vadd.f32 %v2035, %v2059
    %v2072 = vadd.f32 %v2036, %v2059
    %v2073 = vmax.f32 %v2061, 0.0
    %v2074 = vmax.f32 %v2062, 0.0
    %v2075 = vmax.f32 %v2063, 0.0
    %v2076 = vmax.f32 %v2064, 0.0
    %v2077 = vmax.f32 %v2065, 0.0
    %v2078 = vmax.f32 %v2066, 0.0
    %v2079 = vmax.f32 %v2067, 0.0
    %v2080 = vmax.f32 %v2068, 0.0
    %v2081 = vmax.f32 %v2069, 0.0
    %v2082 = vmax.f32 %v2070, 0.0
    %v2083 = vmax.f32 %v2071, 0.0
    %v2084 = vmax.f32 %v2072, 0.0
    %v2085 = vmul.f32 %v2073, %v691
    %v2086 = vmul.f32 %v2074, %v695
    %v2087 = vmul.f32 %v2075, %v699
    %v2088 = vmul.f32 %v2076, %v691
    %v2089 = vmul.f32 %v2077, %v695
    %v2090 = vmul.f32 %v2078, %v699
    %v2091 = vmul.f32 %v2079, %v691
    %v2092 = vmul.f32 %v2080, %v695
    %v2093 = vmul.f32 %v2081, %v699
    %v2094 = vmul.f32 %v2082, %v691
    %v2095 = vmul.f32 %v2083, %v695
    %v2096 = vmul.f32 %v2084, %v699
    %v2097 = vpack.c.bf16 %v2088, %v2085
    %v2098 = vpack.c.bf16 %v2089, %v2086
    %v2099 = vpack.c.bf16 %v2090, %v2087
    %v2100 = vpack.c.bf16 %v2094, %v2091
    %v2101 = vpack.c.bf16 %v2095, %v2092
    %v2102 = vpack.c.bf16 %v2096, %v2093
    %2109 = vrot.lane.b32.xlu0 %v2097, 127
    %v2110 = vpop.permute.xlu0 %2109
    %2111 = vrot.lane.b32.xlu0 %v2098, 127
    %v2112 = vpop.permute.xlu0 %2111
    %2113 = vrot.lane.b32.xlu0 %v2099, 127
    %v2114 = vpop.permute.xlu0 %2113
    %2115 = vrot.lane.b32.xlu0 %v2100, 127
    %v2116 = vpop.permute.xlu0 %2115
    %2117 = vrot.lane.b32.xlu0 %v2101, 127
    %v2118 = vpop.permute.xlu0 %2117
    %2119 = vrot.lane.b32.xlu0 %v2102, 127
    %v2120 = vpop.permute.xlu0 %2119
    %v2121 = vsel %vm90, %v2110, %v2112
    %v2122 = vsel %vm90, %v2112, %v2114
    %v2123 = vsel %vm90, %v2116, %v2118
    %v2124 = vsel %vm90, %v2118, %v2120
    %2131 = vrot.lane.b32.xlu0 %v2097, 126
    %v2132 = vpop.permute.xlu0 %2131
    %2133 = vrot.lane.b32.xlu0 %v2098, 126
    %v2134 = vpop.permute.xlu0 %2133
    %2135 = vrot.lane.b32.xlu0 %v2099, 126
    %v2136 = vpop.permute.xlu0 %2135
    %2137 = vrot.lane.b32.xlu0 %v2100, 126
    %v2138 = vpop.permute.xlu0 %2137
    %2139 = vrot.lane.b32.xlu0 %v2101, 126
    %v2140 = vpop.permute.xlu0 %2139
    %2141 = vrot.lane.b32.xlu0 %v2102, 126
    %v2142 = vpop.permute.xlu0 %2141
    %v2143 = vsel %vm113, %v2132, %v2134
    %v2144 = vsel %vm113, %v2134, %v2136
    %v2145 = vsel %vm113, %v2138, %v2140
    %v2146 = vsel %vm113, %v2140, %v2142
    %v2153 = vld [vmem:[#allocation5] sm:$0xf]
    %v2154 = vld [vmem:[#allocation5 + $0x4] sm:$0xf]
    %v2155 = vld [vmem:[#allocation5 + $0x8] sm:$0xf]
    %v2156 = vld [vmem:[#allocation5 + $0xc] sm:$0xf]
    %v2157 = vld [vmem:[%s775] sm:$0xf]
    %v2158 = vld [vmem:[%s775 + $0x4] sm:$0xf]
    %v2159 = vld [vmem:[%s775 + $0x8] sm:$0xf]
    %v2160 = vld [vmem:[%s775 + $0xc] sm:$0xf]
    %v2165 = vunpack.c.l.b16 %v2157
    %v2166 = vunpack.c.l.b16 %v2158
    %v2167 = vunpack.c.l.b16 %v2159
    %v2168 = vunpack.c.l.b16 %v2160
    %v2169 = vpack.c.b16 %v2166, %v2165
    %v2170 = vpack.c.b16 %v2168, %v2167
    %2171 = vrot.lane.b32.xlu0 %v2097, 110
    %v2172 = vpop.permute.xlu0 %2171
    %2173 = vrot.lane.b32.xlu0 %v2098, 110
    %v2174 = vpop.permute.xlu0 %2173
    %2175 = vrot.lane.b32.xlu0 %v2099, 110
    %v2176 = vpop.permute.xlu0 %2175
    %2177 = vrot.lane.b32.xlu0 %v2100, 110
    %v2178 = vpop.permute.xlu0 %2177
    %2179 = vrot.lane.b32.xlu0 %v2101, 110
    %v2180 = vpop.permute.xlu0 %2179
    %2181 = vrot.lane.b32.xlu0 %v2102, 110
    %v2182 = vpop.permute.xlu0 %2181
    %2183 = vrot.lane.b32.xlu0 %v2121, 110
    %v2184 = vpop.permute.xlu0 %2183
    %2185 = vrot.lane.b32.xlu0 %v2122, 110
    %v2186 = vpop.permute.xlu0 %2185
    %2187 = vrot.lane.b32.xlu0 %v2114, 110
    %v2188 = vpop.permute.xlu0 %2187
    %2189 = vrot.lane.b32.xlu0 %v2123, 110
    %v2190 = vpop.permute.xlu0 %2189
    %2191 = vrot.lane.b32.xlu0 %v2124, 110
    %v2192 = vpop.permute.xlu0 %2191
    %2193 = vrot.lane.b32.xlu0 %v2120, 110
    %v2194 = vpop.permute.xlu0 %2193
    %2195 = vrot.lane.b32.xlu0 %v2143, 110
    %v2196 = vpop.permute.xlu0 %2195
    %2197 = vrot.lane.b32.xlu0 %v2144, 110
    %v2198 = vpop.permute.xlu0 %2197
    %2199 = vrot.lane.b32.xlu0 %v2136, 110
    %v2200 = vpop.permute.xlu0 %2199
    %2201 = vrot.lane.b32.xlu0 %v2145, 110
    %v2202 = vpop.permute.xlu0 %2201
    %2203 = vrot.lane.b32.xlu0 %v2146, 110
    %v2204 = vpop.permute.xlu0 %2203
    %2205 = vrot.lane.b32.xlu0 %v2142, 110
    %v2206 = vpop.permute.xlu0 %2205
    %v2207 = vsel %vm179, %v2172, %v2174
    %v2208 = vsel %vm179, %v2174, %v2176
    %v2209 = vsel %vm179, %v2178, %v2180
    %v2210 = vsel %vm179, %v2180, %v2182
    %v2211 = vsel %vm179, %v2184, %v2186
    %v2212 = vsel %vm179, %v2186, %v2188
    %v2213 = vsel %vm179, %v2190, %v2192
    %v2214 = vsel %vm179, %v2192, %v2194
    %v2215 = vsel %vm179, %v2196, %v2198
    %v2216 = vsel %vm179, %v2198, %v2200
    %v2217 = vsel %vm179, %v2202, %v2204
    %v2218 = vsel %vm179, %v2204, %v2206
    %v2238 = vsel %vm210, %v2169, 0
    %v2241 = vsel %vm210, %v2170, 0
    %2243 = vmatprep.subr.bf16.mxu0 %v2208
    %2244 = vmatpush1.bf16.msra.mxu0 %v2207
    %2245 = vmatprep.subr.bf16.mxu0 %v2210
    %2246 = vmatpush1.bf16.msra.mxu0 %v2209
    %2247 = vmatprep.subr.bf16.mxu0 %v2212
    %2248 = vmatpush1.bf16.msra.mxu0 %v2211
    %2249 = vmatprep.subr.bf16.mxu0 %v2214
    %2250 = vmatpush1.bf16.msra.mxu0 %v2213
    %2251 = vmatprep.subr.bf16.mxu0 %v2216
    %2252 = vmatpush1.bf16.msra.mxu0 %v2215
    %2253 = vmatprep.subr.bf16.mxu0 %v2218
    %2254 = vmatpush1.bf16.msra.mxu0 %v2217
    %2255 = vmatprep.subr.bf16.mxu0 0
    %2256 = vmatpush1.bf16.msra.mxu0 0
    %2257 = vmatprep.subr.bf16.mxu0 0
    %2258 = vmatpush1.bf16.msra.mxu0 0
    %2259 = vmatprep.subr.bf16.mxu0 0
    %2260 = vmatpush1.bf16.msra.mxu0 0
    %2261 = vmatprep.subr.bf16.mxu0 0
    %2262 = vmatpush1.bf16.msra.mxu0 0
    %2263 = vmatprep.subr.bf16.mxu0 0
    %2264 = vmatpush1.bf16.msra.mxu0 0
    %2265 = vmatprep.subr.bf16.mxu0 0
    %2266 = vmatpush1.bf16.msra.mxu0 0
    %2267 = vmatprep.subr.bf16.mxu0 0
    %2268 = vmatpush1.bf16.msra.mxu0 0
    %2269 = vmatprep.subr.bf16.mxu0 0
    %2270 = vmatpush1.bf16.msra.mxu0 0
    %2271 = vmatprep.subr.bf16.mxu0 0
    %2272 = vmatpush1.bf16.msra.mxu0 0
    %2273 = vmatprep.subr.bf16.mxu0 0
    %2274 = vmatpush1.bf16.msra.mxu0 0
    %2275 = vmatprep.mubr.bf16.mxu0 0
    %2276 = vmatmul.mubr.bf16.gmra.mrb[0].mxu0 %v2238
    %v2277 = vpop.f32.mrb[0].mxu0
    %v2278 = vadd.f32 0.0, %v2277
    %v2279 = vpop.f32.mrb[0].mxu0
    %v2280 = vadd.f32 0.0, %v2279
    %v2281 = vpop.f32.mrb[0].mxu0
    %v2282 = vadd.f32 0.0, %v2281
    %v2283 = vpop.f32.mrb[0].mxu0
    %v2284 = vadd.f32 0.0, %v2283
    %2285 = vmatprep.mubr.bf16.mxu0 0
    %2286 = vmatmul.mubr.bf16.gmra.mrb[0].mxu0 %v2241
    %v2287 = vpop.f32.mrb[0].mxu0
    %v2288 = vadd.f32 0.0, %v2287
    %v2289 = vpop.f32.mrb[0].mxu0
    %v2290 = vadd.f32 0.0, %v2289
    %v2291 = vpop.f32.mrb[0].mxu0
    %v2292 = vadd.f32 0.0, %v2291
    %v2293 = vpop.f32.mrb[0].mxu0
    %v2294 = vadd.f32 0.0, %v2293
    %2295 = vdwg.mxu0
    %2296 = vmatprep.subr.bf16.mxu0 0
    %2297 = vmatpush1.bf16.msra.mxu0 %v2176
    %2298 = vmatprep.subr.bf16.mxu0 0
    %2299 = vmatpush1.bf16.msra.mxu0 %v2182
    %2300 = vmatprep.subr.bf16.mxu0 0
    %2301 = vmatpush1.bf16.msra.mxu0 %v2188
    %2302 = vmatprep.subr.bf16.mxu0 0
    %2303 = vmatpush1.bf16.msra.mxu0 %v2194
    %2304 = vmatprep.subr.bf16.mxu0 0
    %2305 = vmatpush1.bf16.msra.mxu0 %v2200
    %2306 = vmatprep.subr.bf16.mxu0 0
    %2307 = vmatpush1.bf16.msra.mxu0 %v2206
    %2308 = vmatprep.subr.bf16.mxu0 0
    %2309 = vmatpush1.bf16.msra.mxu0 0
    %2310 = vmatprep.subr.bf16.mxu0 0
    %2311 = vmatpush1.bf16.msra.mxu0 0
    %2312 = vmatprep.subr.bf16.mxu0 0
    %2313 = vmatpush1.bf16.msra.mxu0 0
    %2314 = vmatprep.subr.bf16.mxu0 0
    %2315 = vmatpush1.bf16.msra.mxu0 0
    %2316 = vmatprep.subr.bf16.mxu0 0
    %2317 = vmatpush1.bf16.msra.mxu0 0
    %2318 = vmatprep.subr.bf16.mxu0 0
    %2319 = vmatpush1.bf16.msra.mxu0 0
    %2320 = vmatprep.subr.bf16.mxu0 0
    %2321 = vmatpush1.bf16.msra.mxu0 0
    %2322 = vmatprep.subr.bf16.mxu0 0
    %2323 = vmatpush1.bf16.msra.mxu0 0
    %2324 = vmatprep.subr.bf16.mxu0 0
    %2325 = vmatpush1.bf16.msra.mxu0 0
    %2326 = vmatprep.subr.bf16.mxu0 0
    %2327 = vmatpush1.bf16.msra.mxu0 0
    %2328 = vmatprep.mubr.bf16.mxu0 0
    %2329 = vmatmul.mubr.bf16.gmra.mrb[0].mxu0 %v2238
    %v2330 = vpop.f32.mrb[0].mxu0
    %v2331 = vadd.f32 0.0, %v2330
    %v2332 = vpop.f32.mrb[0].mxu0
    %v2333 = vpop.f32.mrb[0].mxu0
    %v2334 = vadd.f32 0.0, %v2333
    %v2335 = vpop.f32.mrb[0].mxu0
    %2336 = vmatprep.mubr.bf16.mxu0 0
    %2337 = vmatmul.mubr.bf16.gmra.mrb[0].mxu0 %v2241
    %v2338 = vpop.f32.mrb[0].mxu0
    %v2339 = vadd.f32 0.0, %v2338
    %v2340 = vpop.f32.mrb[0].mxu0
    %v2341 = vpop.f32.mrb[0].mxu0
    %v2342 = vadd.f32 0.0, %v2341
    %v2343 = vpop.f32.mrb[0].mxu0
    %2344 = vdwg.mxu0
    %v2349 = vunpack.c.l.b16 %v2153
    %v2350 = vunpack.c.l.b16 %v2154
    %v2351 = vunpack.c.l.b16 %v2155
    %v2352 = vunpack.c.l.b16 %v2156
    %v2353 = vpack.c.b16 %v2350, %v2349
    %v2354 = vpack.c.b16 %v2352, %v2351
    %v2356 = vsel %vm210, %v2353, 0
    %v2359 = vsel %vm210, %v2354, 0
    %2361 = vmatprep.subr.bf16.mxu0 %v2098
    %2362 = vmatpush1.bf16.msra.mxu0 %v2097
    %2363 = vmatprep.subr.bf16.mxu0 %v2101
    %2364 = vmatpush1.bf16.msra.mxu0 %v2100
    %2365 = vmatprep.subr.bf16.mxu0 %v2122
    %2366 = vmatpush1.bf16.msra.mxu0 %v2121
    %2367 = vmatprep.subr.bf16.mxu0 %v2124
    %2368 = vmatpush1.bf16.msra.mxu0 %v2123
    %2369 = vmatprep.subr.bf16.mxu0 %v2144
    %2370 = vmatpush1.bf16.msra.mxu0 %v2143
    %2371 = vmatprep.subr.bf16.mxu0 %v2146
    %2372 = vmatpush1.bf16.msra.mxu0 %v2145
    %2373 = vmatprep.subr.bf16.mxu0 0
    %2374 = vmatpush1.bf16.msra.mxu0 0
    %2375 = vmatprep.subr.bf16.mxu0 0
    %2376 = vmatpush1.bf16.msra.mxu0 0
    %2377 = vmatprep.subr.bf16.mxu0 0
    %2378 = vmatpush1.bf16.msra.mxu0 0
    %2379 = vmatprep.subr.bf16.mxu0 0
    %2380 = vmatpush1.bf16.msra.mxu0 0
    %2381 = vmatprep.subr.bf16.mxu0 0
    %2382 = vmatpush1.bf16.msra.mxu0 0
    %2383 = vmatprep.subr.bf16.mxu0 0
    %2384 = vmatpush1.bf16.msra.mxu0 0
    %2385 = vmatprep.subr.bf16.mxu0 0
    %2386 = vmatpush1.bf16.msra.mxu0 0
    %2387 = vmatprep.subr.bf16.mxu0 0
    %2388 = vmatpush1.bf16.msra.mxu0 0
    %2389 = vmatprep.subr.bf16.mxu0 0
    %2390 = vmatpush1.bf16.msra.mxu0 0
    %2391 = vmatprep.subr.bf16.mxu0 0
    %2392 = vmatpush1.bf16.msra.mxu0 0
    %2393 = vmatprep.mubr.bf16.mxu0 0
    %2394 = vmatmul.mubr.bf16.gmra.mrb[0].mxu0 %v2356
    %v2395 = vpop.f32.mrb[0].mxu0
    %v2396 = vadd.f32 %v2278, %v2395
    %v2397 = vpop.f32.mrb[0].mxu0
    %v2398 = vadd.f32 %v2280, %v2397
    %v2399 = vpop.f32.mrb[0].mxu0
    %v2400 = vadd.f32 %v2282, %v2399
    %v2401 = vpop.f32.mrb[0].mxu0
    %v2402 = vadd.f32 %v2284, %v2401
    %2403 = vmatprep.mubr.bf16.mxu0 0
    %2404 = vmatmul.mubr.bf16.gmra.mrb[0].mxu0 %v2359
    %v2405 = vpop.f32.mrb[0].mxu0
    %v2406 = vadd.f32 %v2288, %v2405
    %v2407 = vpop.f32.mrb[0].mxu0
    %v2408 = vadd.f32 %v2290, %v2407
    %v2409 = vpop.f32.mrb[0].mxu0
    %v2410 = vadd.f32 %v2292, %v2409
    %v2411 = vpop.f32.mrb[0].mxu0
    %v2412 = vadd.f32 %v2294, %v2411
    %2413 = vdwg.mxu0
    %2414 = vmatprep.subr.bf16.mxu0 0
    %2415 = vmatpush1.bf16.msra.mxu0 %v2099
    %2416 = vmatprep.subr.bf16.mxu0 0
    %2417 = vmatpush1.bf16.msra.mxu0 %v2102
    %2418 = vmatprep.subr.bf16.mxu0 0
    %2419 = vmatpush1.bf16.msra.mxu0 %v2114
    %2420 = vmatprep.subr.bf16.mxu0 0
    %2421 = vmatpush1.bf16.msra.mxu0 %v2120
    %2422 = vmatprep.subr.bf16.mxu0 0
    %2423 = vmatpush1.bf16.msra.mxu0 %v2136
    %2424 = vmatprep.subr.bf16.mxu0 0
    %2425 = vmatpush1.bf16.msra.mxu0 %v2142
    %2426 = vmatprep.subr.bf16.mxu0 0
    %2427 = vmatpush1.bf16.msra.mxu0 0
    %2428 = vmatprep.subr.bf16.mxu0 0
    %2429 = vmatpush1.bf16.msra.mxu0 0
    %2430 = vmatprep.subr.bf16.mxu0 0
    %2431 = vmatpush1.bf16.msra.mxu0 0
    %2432 = vmatprep.subr.bf16.mxu0 0
    %2433 = vmatpush1.bf16.msra.mxu0 0
    %2434 = vmatprep.subr.bf16.mxu0 0
    %2435 = vmatpush1.bf16.msra.mxu0 0
    %2436 = vmatprep.subr.bf16.mxu0 0
    %2437 = vmatpush1.bf16.msra.mxu0 0
    %2438 = vmatprep.subr.bf16.mxu0 0
    %2439 = vmatpush1.bf16.msra.mxu0 0
    %2440 = vmatprep.subr.bf16.mxu0 0
    %2441 = vmatpush1.bf16.msra.mxu0 0
    %2442 = vmatprep.subr.bf16.mxu0 0
    %2443 = vmatpush1.bf16.msra.mxu0 0
    %2444 = vmatprep.subr.bf16.mxu0 0
    %2445 = vmatpush1.bf16.msra.mxu0 0
    %2446 = vmatprep.mubr.bf16.mxu0 0
    %2447 = vmatmul.mubr.bf16.gmra.mrb[0].mxu0 %v2356
    %v2448 = vpop.f32.mrb[0].mxu0
    %v2449 = vadd.f32 %v2331, %v2448
    %v2450 = vpop.f32.mrb[0].mxu0
    %v2451 = vpop.f32.mrb[0].mxu0
    %v2452 = vadd.f32 %v2334, %v2451
    %v2453 = vpop.f32.mrb[0].mxu0
    %2454 = vmatprep.mubr.bf16.mxu0 0
    %2455 = vmatmul.mubr.bf16.gmra.mrb[0].mxu0 %v2359
    %v2456 = vpop.f32.mrb[0].mxu0
    %v2457 = vadd.f32 %v2339, %v2456
    %v2458 = vpop.f32.mrb[0].mxu0
    %v2459 = vpop.f32.mrb[0].mxu0
    %v2460 = vadd.f32 %v2342, %v2459
    %v2461 = vpop.f32.mrb[0].mxu0
    %2462 = vdwg.mxu0
    %v2463 = vld [vmem:[%s1082] sm:$0xf]
    %v2464 = vld [vmem:[%s1082 + $0x4] sm:$0xf]
    %v2465 = vld [vmem:[%s1082 + $0x8] sm:$0xf]
    %v2466 = vld [vmem:[%s1082 + $0xc] sm:$0xf]
    %v2471 = vunpack.c.l.b16 %v2463
    %v2472 = vunpack.c.l.b16 %v2464
    %v2473 = vunpack.c.l.b16 %v2465
    %v2474 = vunpack.c.l.b16 %v2466
    %v2475 = vpack.c.b16 %v2472, %v2471
    %v2476 = vpack.c.b16 %v2474, %v2473
    %2477 = vrot.lane.b32.xlu0 %v2097, 92
    %v2478 = vpop.permute.xlu0 %2477
    %2479 = vrot.lane.b32.xlu0 %v2098, 92
    %v2480 = vpop.permute.xlu0 %2479
    %2481 = vrot.lane.b32.xlu0 %v2099, 92
    %v2482 = vpop.permute.xlu0 %2481
    %2483 = vrot.lane.b32.xlu0 %v2100, 92
    %v2484 = vpop.permute.xlu0 %2483
    %2485 = vrot.lane.b32.xlu0 %v2101, 92
    %v2486 = vpop.permute.xlu0 %2485
    %2487 = vrot.lane.b32.xlu0 %v2102, 92
    %v2488 = vpop.permute.xlu0 %2487
    %2489 = vrot.lane.b32.xlu0 %v2121, 92
    %v2490 = vpop.permute.xlu0 %2489
    %2491 = vrot.lane.b32.xlu0 %v2122, 92
    %v2492 = vpop.permute.xlu0 %2491
    %2493 = vrot.lane.b32.xlu0 %v2114, 92
    %v2494 = vpop.permute.xlu0 %2493
    %2495 = vrot.lane.b32.xlu0 %v2123, 92
    %v2496 = vpop.permute.xlu0 %2495
    %2497 = vrot.lane.b32.xlu0 %v2124, 92
    %v2498 = vpop.permute.xlu0 %2497
    %2499 = vrot.lane.b32.xlu0 %v2120, 92
    %v2500 = vpop.permute.xlu0 %2499
    %2501 = vrot.lane.b32.xlu0 %v2143, 92
    %v2502 = vpop.permute.xlu0 %2501
    %2503 = vrot.lane.b32.xlu0 %v2144, 92
    %v2504 = vpop.permute.xlu0 %2503
    %2505 = vrot.lane.b32.xlu0 %v2136, 92
    %v2506 = vpop.permute.xlu0 %2505
    %2507 = vrot.lane.b32.xlu0 %v2145, 92
    %v2508 = vpop.permute.xlu0 %2507
    %2509 = vrot.lane.b32.xlu0 %v2146, 92
    %v2510 = vpop.permute.xlu0 %2509
    %2511 = vrot.lane.b32.xlu0 %v2142, 92
    %v2512 = vpop.permute.xlu0 %2511
    %v2513 = vsel %vm488, %v2478, %v2480
    %v2514 = vsel %vm488, %v2480, %v2482
    %v2515 = vsel %vm488, %v2484, %v2486
    %v2516 = vsel %vm488, %v2486, %v2488
    %v2517 = vsel %vm488, %v2490, %v2492
    %v2518 = vsel %vm488, %v2492, %v2494
    %v2519 = vsel %vm488, %v2496, %v2498
    %v2520 = vsel %vm488, %v2498, %v2500
    %v2521 = vsel %vm488, %v2502, %v2504
    %v2522 = vsel %vm488, %v2504, %v2506
    %v2523 = vsel %vm488, %v2508, %v2510
    %v2524 = vsel %vm488, %v2510, %v2512
    %v2544 = vsel %vm210, %v2475, 0
    %v2547 = vsel %vm210, %v2476, 0
    %2549 = vmatprep.subr.bf16.mxu0 %v2514
    %2550 = vmatpush1.bf16.msra.mxu0 %v2513
    %2551 = vmatprep.subr.bf16.mxu0 %v2516
    %2552 = vmatpush1.bf16.msra.mxu0 %v2515
    %2553 = vmatprep.subr.bf16.mxu0 %v2518
    %2554 = vmatpush1.bf16.msra.mxu0 %v2517
    %2555 = vmatprep.subr.bf16.mxu0 %v2520
    %2556 = vmatpush1.bf16.msra.mxu0 %v2519
    %2557 = vmatprep.subr.bf16.mxu0 %v2522
    %2558 = vmatpush1.bf16.msra.mxu0 %v2521
    %2559 = vmatprep.subr.bf16.mxu0 %v2524
    %2560 = vmatpush1.bf16.msra.mxu0 %v2523
    %2561 = vmatprep.subr.bf16.mxu0 0
    %2562 = vmatpush1.bf16.msra.mxu0 0
    %2563 = vmatprep.subr.bf16.mxu0 0
    %2564 = vmatpush1.bf16.msra.mxu0 0
    %2565 = vmatprep.subr.bf16.mxu0 0
    %2566 = vmatpush1.bf16.msra.mxu0 0
    %2567 = vmatprep.subr.bf16.mxu0 0
    %2568 = vmatpush1.bf16.msra.mxu0 0
    %2569 = vmatprep.subr.bf16.mxu0 0
    %2570 = vmatpush1.bf16.msra.mxu0 0
    %2571 = vmatprep.subr.bf16.mxu0 0
    %2572 = vmatpush1.bf16.msra.mxu0 0
    %2573 = vmatprep.subr.bf16.mxu0 0
    %2574 = vmatpush1.bf16.msra.mxu0 0
    %2575 = vmatprep.subr.bf16.mxu0 0
    %2576 = vmatpush1.bf16.msra.mxu0 0
    %2577 = vmatprep.subr.bf16.mxu0 0
    %2578 = vmatpush1.bf16.msra.mxu0 0
    %2579 = vmatprep.subr.bf16.mxu0 0
    %2580 = vmatpush1.bf16.msra.mxu0 0
    %2581 = vmatprep.mubr.bf16.mxu0 0
    %2582 = vmatmul.mubr.bf16.gmra.mrb[0].mxu0 %v2544
    %v2583 = vpop.f32.mrb[0].mxu0
    %v2584 = vadd.f32 0.0, %v2583
    %v2585 = vpop.f32.mrb[0].mxu0
    %v2586 = vadd.f32 0.0, %v2585
    %v2587 = vpop.f32.mrb[0].mxu0
    %v2588 = vadd.f32 0.0, %v2587
    %v2589 = vpop.f32.mrb[0].mxu0
    %v2590 = vadd.f32 0.0, %v2589
    %2591 = vmatprep.mubr.bf16.mxu0 0
    %2592 = vmatmul.mubr.bf16.gmra.mrb[0].mxu0 %v2547
    %v2593 = vpop.f32.mrb[0].mxu0
    %v2594 = vadd.f32 0.0, %v2593
    %v2595 = vpop.f32.mrb[0].mxu0
    %v2596 = vadd.f32 0.0, %v2595
    %v2597 = vpop.f32.mrb[0].mxu0
    %v2598 = vadd.f32 0.0, %v2597
    %v2599 = vpop.f32.mrb[0].mxu0
    %v2600 = vadd.f32 0.0, %v2599
    %2601 = vdwg.mxu0
    %2602 = vmatprep.subr.bf16.mxu0 0
    %2603 = vmatpush1.bf16.msra.mxu0 %v2482
    %2604 = vmatprep.subr.bf16.mxu0 0
    %2605 = vmatpush1.bf16.msra.mxu0 %v2488
    %2606 = vmatprep.subr.bf16.mxu0 0
    %2607 = vmatpush1.bf16.msra.mxu0 %v2494
    %2608 = vmatprep.subr.bf16.mxu0 0
    %2609 = vmatpush1.bf16.msra.mxu0 %v2500
    %2610 = vmatprep.subr.bf16.mxu0 0
    %2611 = vmatpush1.bf16.msra.mxu0 %v2506
    %2612 = vmatprep.subr.bf16.mxu0 0
    %2613 = vmatpush1.bf16.msra.mxu0 %v2512
    %2614 = vmatprep.subr.bf16.mxu0 0
    %2615 = vmatpush1.bf16.msra.mxu0 0
    %2616 = vmatprep.subr.bf16.mxu0 0
    %2617 = vmatpush1.bf16.msra.mxu0 0
    %2618 = vmatprep.subr.bf16.mxu0 0
    %2619 = vmatpush1.bf16.msra.mxu0 0
    %2620 = vmatprep.subr.bf16.mxu0 0
    %2621 = vmatpush1.bf16.msra.mxu0 0
    %2622 = vmatprep.subr.bf16.mxu0 0
    %2623 = vmatpush1.bf16.msra.mxu0 0
    %2624 = vmatprep.subr.bf16.mxu0 0
    %2625 = vmatpush1.bf16.msra.mxu0 0
    %2626 = vmatprep.subr.bf16.mxu0 0
    %2627 = vmatpush1.bf16.msra.mxu0 0
    %2628 = vmatprep.subr.bf16.mxu0 0
    %2629 = vmatpush1.bf16.msra.mxu0 0
    %2630 = vmatprep.subr.bf16.mxu0 0
    %2631 = vmatpush1.bf16.msra.mxu0 0
    %2632 = vmatprep.subr.bf16.mxu0 0
    %2633 = vmatpush1.bf16.msra.mxu0 0
    %2634 = vmatprep.mubr.bf16.mxu0 0
    %2635 = vmatmul.mubr.bf16.gmra.mrb[0].mxu0 %v2544
    %v2636 = vpop.f32.mrb[0].mxu0
    %v2637 = vadd.f32 0.0, %v2636
    %v2638 = vpop.f32.mrb[0].mxu0
    %v2639 = vpop.f32.mrb[0].mxu0
    %v2640 = vadd.f32 0.0, %v2639
    %v2641 = vpop.f32.mrb[0].mxu0
    %2642 = vmatprep.mubr.bf16.mxu0 0
    %2643 = vmatmul.mubr.bf16.gmra.mrb[0].mxu0 %v2547
    %v2644 = vpop.f32.mrb[0].mxu0
    %v2645 = vadd.f32 0.0, %v2644
    %v2646 = vpop.f32.mrb[0].mxu0
    %v2647 = vpop.f32.mrb[0].mxu0
    %v2648 = vadd.f32 0.0, %v2647
    %v2649 = vpop.f32.mrb[0].mxu0
    %2650 = vdwg.mxu0
    %v2651 = vadd.f32 %v2396, %v2584
    %v2652 = vadd.f32 %v2398, %v2586
    %v2653 = vadd.f32 %v2449, %v2637
    %v2654 = vadd.f32 %v2400, %v2588
    %v2655 = vadd.f32 %v2402, %v2590
    %v2656 = vadd.f32 %v2452, %v2640
    %v2657 = vadd.f32 %v2406, %v2594
    %v2658 = vadd.f32 %v2408, %v2596
    %v2659 = vadd.f32 %v2457, %v2645
    %v2660 = vadd.f32 %v2410, %v2598
    %v2661 = vadd.f32 %v2412, %v2600
    %v2662 = vadd.f32 %v2460, %v2648
    %v2663 = vld [vmem:[%s4] sm:$0xff]
    %v2664 = vld [vmem:[%s4 + $0x8] sm:$0xff]
    %v2665 = vld [vmem:[%s4 + $0x10] sm:$0xff]
    %v2666 = vld [vmem:[%s4 + $0x18] sm:$0xff]
    %2668 = vset.pattern.permute.xlu0 0
    %2669 = vperm.xlu0 %2668, %v2663
    %v2670 = vpop.permute.xlu0 %2669
    %2673 = vset.pattern.permute.xlu0 0
    %2674 = vperm.xlu0 %2673, %v2664
    %v2675 = vpop.permute.xlu0 %2674
    %2678 = vset.pattern.permute.xlu0 0
    %2679 = vperm.xlu0 %2678, %v2665
    %v2680 = vpop.permute.xlu0 %2679
    %2683 = vset.pattern.permute.xlu0 0
    %2684 = vperm.xlu0 %2683, %v2666
    %v2685 = vpop.permute.xlu0 %2684
    %v2687 = vadd.f32 %v2651, %v2670
    %v2688 = vadd.f32 %v2652, %v2670
    %v2689 = vadd.f32 %v2653, %v2670
    %v2690 = vadd.f32 %v2654, %v2675
    %v2691 = vadd.f32 %v2655, %v2675
    %v2692 = vadd.f32 %v2656, %v2675
    %v2693 = vadd.f32 %v2657, %v2680
    %v2694 = vadd.f32 %v2658, %v2680
    %v2695 = vadd.f32 %v2659, %v2680
    %v2696 = vadd.f32 %v2660, %v2685
    %v2697 = vadd.f32 %v2661, %v2685
    %v2698 = vadd.f32 %v2662, %v2685
    %2711 = vrot.lane.b32.xlu0 %v2687, 38
    %v2712 = vpop.permute.xlu0 %2711
    %2713 = vrot.lane.b32.xlu0 %v2688, 38
    %v2714 = vpop.permute.xlu0 %2713
    %2715 = vrot.lane.b32.xlu0 %v2689, 38
    %v2716 = vpop.permute.xlu0 %2715
    %2717 = vrot.lane.b32.xlu0 %v2690, 38
    %v2718 = vpop.permute.xlu0 %2717
    %2719 = vrot.lane.b32.xlu0 %v2691, 38
    %v2720 = vpop.permute.xlu0 %2719
    %2721 = vrot.lane.b32.xlu0 %v2692, 38
    %v2722 = vpop.permute.xlu0 %2721
    %2723 = vrot.lane.b32.xlu0 %v2693, 38
    %v2724 = vpop.permute.xlu0 %2723
    %2725 = vrot.lane.b32.xlu0 %v2694, 38
    %v2726 = vpop.permute.xlu0 %2725
    %2727 = vrot.lane.b32.xlu0 %v2695, 38
    %v2728 = vpop.permute.xlu0 %2727
    %2729 = vrot.lane.b32.xlu0 %v2696, 38
    %v2730 = vpop.permute.xlu0 %2729
    %2731 = vrot.lane.b32.xlu0 %v2697, 38
    %v2732 = vpop.permute.xlu0 %2731
    %2733 = vrot.lane.b32.xlu0 %v2698, 38
    %v2734 = vpop.permute.xlu0 %2733
    %v2735 = vsel %vm1355, %v2712, %v2714
    %v2736 = vsel %vm1355, %v2714, %v2716
    %v2737 = vsel %vm1355, %v2718, %v2720
    %v2738 = vsel %vm1355, %v2720, %v2722
    %v2739 = vsel %vm1355, %v2724, %v2726
    %v2740 = vsel %vm1355, %v2726, %v2728
    %v2741 = vsel %vm1355, %v2730, %v2732
    %v2742 = vsel %vm1355, %v2732, %v2734
    %v2755 = vadd.f32 %v1459, %v2712
    %v2756 = vadd.f32 %v1460, %v2735
    %v2757 = vadd.f32 %v1461, %v2736
    %v2758 = vadd.f32 %v1462, %v2718
    %v2759 = vadd.f32 %v1463, %v2737
    %v2760 = vadd.f32 %v1464, %v2738
    %v2761 = vadd.f32 %v1465, %v2724
    %v2762 = vadd.f32 %v1466, %v2739
    %v2763 = vadd.f32 %v1467, %v2740
    %v2764 = vadd.f32 %v1468, %v2730
    %v2765 = vadd.f32 %v1469, %v2741
    %v2766 = vadd.f32 %v1470, %v2742
    %2779 = vrot.lane.b32.xlu0 %v2755, 90
    %v2780 = vpop.permute.xlu0 %2779
    %2781 = vrot.lane.b32.xlu0 %v2756, 90
    %v2782 = vpop.permute.xlu0 %2781
    %2783 = vrot.lane.b32.xlu0 %v2757, 90
    %v2784 = vpop.permute.xlu0 %2783
    %2785 = vrot.lane.b32.xlu0 %v2758, 90
    %v2786 = vpop.permute.xlu0 %2785
    %2787 = vrot.lane.b32.xlu0 %v2759, 90
    %v2788 = vpop.permute.xlu0 %2787
    %2789 = vrot.lane.b32.xlu0 %v2760, 90
    %v2790 = vpop.permute.xlu0 %2789
    %2791 = vrot.lane.b32.xlu0 %v2761, 90
    %v2792 = vpop.permute.xlu0 %2791
    %2793 = vrot.lane.b32.xlu0 %v2762, 90
    %v2794 = vpop.permute.xlu0 %2793
    %2795 = vrot.lane.b32.xlu0 %v2763, 90
    %v2796 = vpop.permute.xlu0 %2795
    %2797 = vrot.lane.b32.xlu0 %v2764, 90
    %v2798 = vpop.permute.xlu0 %2797
    %2799 = vrot.lane.b32.xlu0 %v2765, 90
    %v2800 = vpop.permute.xlu0 %2799
    %2801 = vrot.lane.b32.xlu0 %v2766, 90
    %v2802 = vpop.permute.xlu0 %2801
    %v2803 = vsel %vm1424, %v2780, %v2782
    %v2804 = vsel %vm1424, %v2782, %v2784
    %v2805 = vsel %vm1424, %v2786, %v2788
    %v2806 = vsel %vm1424, %v2788, %v2790
    %v2807 = vsel %vm1424, %v2792, %v2794
    %v2808 = vsel %vm1424, %v2794, %v2796
    %v2809 = vsel %vm1424, %v2798, %v2800
    %v2810 = vsel %vm1424, %v2800, %v2802
    %s2823 = scalar_lea.vmem [#allocation7], 96
    %2824 = vst [vmem:[%s2823] sm:$0xff] %v2803
    %2825 = vst [vmem:[%s2823 + $0x8] sm:$0xff] %v2804
    %2826 = vst.msk [vmem:[%s2823 + $0x10] sm:$0xff] %vm1447, %v2784
    %2827 = vst [vmem:[%s2823 + $0x18] sm:$0xff] %v2805
    %2828 = vst [vmem:[%s2823 + $0x20] sm:$0xff] %v2806
    %2829 = vst.msk [vmem:[%s2823 + $0x28] sm:$0xff] %vm1447, %v2790
    %2830 = vst [vmem:[%s2823 + $0x30] sm:$0xff] %v2807
    %2831 = vst [vmem:[%s2823 + $0x38] sm:$0xff] %v2808
    %2832 = vst.msk [vmem:[%s2823 + $0x40] sm:$0xff] %vm1447, %v2796
    %2833 = vst [vmem:[%s2823 + $0x48] sm:$0xff] %v2809
    %2834 = vst [vmem:[%s2823 + $0x50] sm:$0xff] %v2810
    %2835 = vst.msk [vmem:[%s2823 + $0x58] sm:$0xff] %vm1447, %v2802
    // Predicated region
    $region34: #{tpu_custom_call.1} parent=1 // pred_check
      _
    $region35: #{tpu_custom_call.1} parent=1 // pred_check_branch
      %2837 = sbr.rel (0) target = $region37
    $region36: #{tpu_custom_call.1} parent=1 // pred_region
      %s2839 = ssub.s32 3072, 3072
      %2840 = vsyncadd [#allocation4], %s2839
      %s2841 = sshll.u32 [#allocation7], 4
      %s2842 = int_to_ptr.vmem [resolvable:$true] %s2841
      %2847 = dma.vmem_to_hbm [thread:$0]  %s2842, 3072, %s6, [#allocation4], 384, 384, 24
    $region37: #{tpu_custom_call.1} parent=1 // pred_fallthru
      _
    // Predicated region
    $region38: #{tpu_custom_call.1} parent=1 // pred_check
      _
    $region39: #{tpu_custom_call.1} parent=1 // pred_check_branch
      %2849 = sbr.rel (0) target = $region41
    $region40: #{tpu_custom_call.1} parent=1 // pred_region
      %2850 = dma.done [#allocation4], 3072
    $region41: #{tpu_custom_call.1} parent=1 // pred_fallthru
      _
    %2851 = vsyncpa [#allocation3], 1
    %2852 = vsyncpa [#allocation6], 1
    %2853 = vsyncpa [#allocation4], 1

</llo_original>
